<compile_context>
chip_gen: v7x
topology: tpu7x:2x2x1
jax: 0.10.0
libtpu: 0.0.40
codegen_flags: <defaults>
</compile_context>

<pallas_src>
import math

import jax
import jax.numpy as jnp
from jax.experimental import pallas as pl
from jax.experimental.pallas import tpu as pltpu

N_FRAMEWORKS = 5
N_HEADS = 4
LN_EPS = 1e-5
FRAMEWORK_NAMES = ("deontological", "utilitarian", "virtue", "narrative", "care")


# ------------------------------ small helpers --------------------------------

def _round_up(n, m):
    return ((n + m - 1) // m) * m


def _nbytes(shape, dtype):
    return math.prod(shape) * jnp.dtype(dtype).itemsize


def _vmem_limit_bytes():
    """Generation-aware VMEM budget: ~75% of physical per-core VMEM.
    v5e/v6e: ~96 MiB of 128 MiB; v7x: ~48 MiB of 64 MiB."""
    cap = 64 * 1024 * 1024  # conservative default
    try:
        info = pltpu.get_tpu_info()
        cap = int(getattr(info, "vmem_capacity_bytes", cap) or cap)
    except Exception:
        pass
    return min(int(cap * 3 // 4), 100 * 1024 * 1024)


def _pick_tile(total, *, max_tile, align=8, min_steps=2):
    """Tile size <= max_tile, multiple of `align`, minimal tail padding, and
    (when possible) at least `min_steps` grid steps so both v7x TensorCores
    get work under dimension_semantics=('parallel',)."""
    max_tile = max(align, (max_tile // align) * align)
    total_al = max(align, _round_up(total, align))
    steps = max(min_steps, pl.cdiv(total_al, max_tile))
    tile = _round_up(pl.cdiv(total_al, steps), align)
    return min(tile, max_tile)


def _resident(arr):
    """Full-array resident block (constant index_map -> DMA'd once).
    Single-buffered (pl.Buffered(1)) where supported so large resident weights
    don't get double-buffered and eat the v7x 64 MiB VMEM budget."""
    zeros = (0,) * arr.ndim
    idx = lambda *_, _z=zeros: _z
    try:
        return pl.BlockSpec(arr.shape, idx, pipeline_mode=pl.Buffered(1))
    except Exception:
        return pl.BlockSpec(arr.shape, idx)


def _gelu(v):
    # exact (erf) GELU, matching torch.nn.GELU / F.gelu default
    return 0.5 * v * (1.0 + jax.lax.erf(v * (1.0 / math.sqrt(2.0))))


def _softmax(v):
    m = jnp.max(v, axis=-1, keepdims=True)
    e = jnp.exp(v - m)
    return e / jnp.sum(e, axis=-1, keepdims=True)


def _layer_norm(v, g, b):
    mu = jnp.mean(v, axis=-1, keepdims=True)
    var = jnp.mean(jnp.square(v - mu), axis=-1, keepdims=True)
    return (v - mu) * jax.lax.rsqrt(var + LN_EPS) * g + b


# --------------------- stage 1: frameworks + gate + conflict -----------------

def _framework_kernel(
    x_ref,
    gate_w_ref, gate_b_ref,
    fw_w_ref, fw_b_ref,
    comb_w_ref, comb_b_ref,
    cd_w1_ref, cd_b1_ref, cd_w2_ref, cd_b2_ref,
    fw_out_ref, combined_ref, conflict_ref,
):
    TM = x_ref.shape[0]
    FW = fw_w_ref.shape[1]                 # 5 * Fd (fused framework width)
    Fd = FW // N_FRAMEWORKS

    xb = x_ref[...]                        # already bf16 (cast in the wrapper)

    # framework gate (softmax kept in f32)
    gate_logits = jnp.dot(xb, gate_w_ref[...],
                          preferred_element_type=jnp.float32) + gate_b_ref[...]
    gate = _softmax(gate_logits)                                   # (TM, 5) f32

    # fused 5-way framework projection -> one wide matmul + one lane-dense store
    fw_all = jnp.dot(xb, fw_w_ref[...],
                     preferred_element_type=jnp.float32) + fw_b_ref[...]
    fw_out_ref[...] = fw_all                                       # raw (un-gated)

    # expand the gate along the fused feature axis: 4 compares + 4 selects
    # (cheap VPU filler; exact in f32)
    col = jax.lax.broadcasted_iota(jnp.int32, (TM, FW), 1)
    gate_exp = jnp.where(
        col < Fd, gate[:, 0:1],
        jnp.where(col < 2 * Fd, gate[:, 1:2],
                  jnp.where(col < 3 * Fd, gate[:, 2:3],
                            jnp.where(col < 4 * Fd, gate[:, 3:4],
                                      gate[:, 4:5]))))

    gated = (fw_all * gate_exp).astype(jnp.bfloat16)
    combined = jnp.dot(gated, comb_w_ref[...],
                       preferred_element_type=jnp.float32) + comb_b_ref[...]
    combined_ref[...] = combined

    # conflict detector: Linear-GELU, then the (Cd -> 1) layer as a VPU/XLU
    # row-reduction (a 1-column MXU result would be ~1/256 utilization)
    h = _gelu(jnp.dot(combined.astype(jnp.bfloat16), cd_w1_ref[...],
                      preferred_element_type=jnp.float32) + cd_b1_ref[...])
    logits = jnp.sum(h * cd_w2_ref[...], axis=-1, keepdims=True) + cd_b2_ref[...]
    conflict_ref[...] = jax.nn.sigmoid(logits)


# --------------------- stage 2: consensus TransformerEncoderLayer ------------

def _consensus_kernel(
    c_ref,
    in_w_ref, in_b_ref, out_w_ref, out_b_ref,
    ln1_g_ref, ln1_b_ref, ln2_g_ref, ln2_b_ref,
    ff_w1_ref, ff_b1_ref, ff_w2_ref, ff_b2_ref,
    out_ref,
):
    B, TS, D = c_ref.shape
    hd = D // N_HEADS
    R = B * TS
    scale = 1.0 / math.sqrt(hd)

    c = c_ref[...].reshape(R, D)           # f32

    # eval-mode semantics: dropouts are identity.
    # TODO(synk): nn.TransformerEncoderLayer default dropout=0.1 (train mode) not modeled.
    qkv = jnp.dot(c.astype(jnp.bfloat16), in_w_ref[...],
                  preferred_element_type=jnp.float32) + in_b_ref[...]
    q = (qkv[:, 0 * D:1 * D] * scale).reshape(B, TS, D)
    k = qkv[:, 1 * D:2 * D].reshape(B, TS, D)
    v = qkv[:, 2 * D:3 * D].reshape(B, TS, D)

    # Attention across axis 0 (length = B, batch_first=False quirk), laid out so
    # the 128-wide lane axis carries TS/hd.  The tiny B axis is fully unrolled:
    # scores are (TS, 1) lane reductions on the VPU/XLU, softmax runs over the
    # unrolled axis, and the context is B fused multiply-adds of dense (TS, hd)
    # tiles -- no lane-sparse (TS, B, B) tensors and no K=B MXU matmuls.
    attn_rows = []
    for l in range(B):
        head_ctx = []
        for hh in range(N_HEADS):
            lo = hh * hd
            qh = q[l, :, lo:lo + hd]                                 # (TS, hd) f32
            s = [jnp.sum(qh * k[m, :, lo:lo + hd], axis=-1, keepdims=True)
                 for m in range(B)]                                  # B x (TS, 1)
            m_max = s[0]
            for m in range(1, B):
                m_max = jnp.maximum(m_max, s[m])
            e = [jnp.exp(sv - m_max) for sv in s]
            denom = e[0]
            for m in range(1, B):
                denom = denom + e[m]
            inv = pl.reciprocal(denom, approx=True)
            ctx = (e[0] * inv) * v[0, :, lo:lo + hd]
            for m in range(1, B):
                ctx = ctx + (e[m] * inv) * v[m, :, lo:lo + hd]       # (TS, hd)
            head_ctx.append(ctx)

        if hd >= 128:
            # lane-aligned concat -> one full-K (D) output projection
            ctx_all = jnp.concatenate(head_ctx, axis=-1)             # (TS, D)
            attn_l = jnp.dot(ctx_all.astype(jnp.bfloat16), out_w_ref[...],
                             preferred_element_type=jnp.float32)
        else:
            # hd < 128: per-head fold into the output projection (no masked
            # lane writes), accumulated in f32
            attn_l = jnp.dot(head_ctx[0].astype(jnp.bfloat16),
                             out_w_ref[0:hd, :],
                             preferred_element_type=jnp.float32)
            for hh in range(1, N_HEADS):
                lo = hh * hd
                attn_l = attn_l + jnp.dot(head_ctx[hh].astype(jnp.bfloat16),
                                          out_w_ref[lo:lo + hd, :],
                                          preferred_element_type=jnp.float32)
        attn_rows.append(attn_l + out_b_ref[...])

    attn_out = jnp.concatenate(attn_rows, axis=0)                    # (R, D)

    # post-norm TransformerEncoderLayer (norm_first=False default)
    src = _layer_norm(c + attn_out, ln1_g_ref[...], ln1_b_ref[...])
    ff = _gelu(jnp.dot(src.astype(jnp.bfloat16), ff_w1_ref[...],
                       preferred_element_type=jnp.float32) + ff_b1_ref[...])
    ff = jnp.dot(ff.astype(jnp.bfloat16), ff_w2_ref[...],
                 preferred_element_type=jnp.float32) + ff_b2_ref[...]
    src = _layer_norm(src + ff, ln2_g_ref[...], ln2_b_ref[...])
    out_ref[...] = src.reshape(B, TS, D)


# ------------------------------- parameters ----------------------------------

def init_params(key, d_model, conflict_dim=128):
    Fd = d_model // 2
    ffd = 4 * d_model
    keys = iter(jax.random.split(key, 16))

    def lin(k, fan_in, fan_out):
        bound = 1.0 / math.sqrt(fan_in)
        kw, kb = jax.random.split(k)
        w = jax.random.uniform(kw, (fan_in, fan_out), jnp.float32, -bound, bound)
        b = jax.random.uniform(kb, (1, fan_out), jnp.float32, -bound, bound)
        return w, b

    p = {}
    p["gate_w"], p["gate_b"] = lin(next(keys), d_model, N_FRAMEWORKS)
    fw_ws, fw_bs = [], []
    kfw = jax.random.split(next(keys), N_FRAMEWORKS)
    for kf in range(N_FRAMEWORKS):
        w, b = lin(kfw[kf], d_model, Fd)
        fw_ws.append(w)
        fw_bs.append(b[0])
    p["fw_w"] = jnp.stack(fw_ws)                     # (5, D, Fd)
    p["fw_b"] = jnp.stack(fw_bs)                     # (5, Fd)
    p["comb_w"], p["comb_b"] = lin(next(keys), N_FRAMEWORKS * Fd, d_model)
    p["cd_w1"], p["cd_b1"] = lin(next(keys), d_model, conflict_dim)
    p["cd_w2"], p["cd_b2"] = lin(next(keys), conflict_dim, 1)
    p["in_w"], p["in_b"] = lin(next(keys), d_model, 3 * d_model)
    p["out_w"], p["out_b"] = lin(next(keys), d_model, d_model)
    p["ln1_g"] = jnp.ones((1, d_model), jnp.float32)
    p["ln1_b"] = jnp.zeros((1, d_model), jnp.float32)
    p["ln2_g"] = jnp.ones((1, d_model), jnp.float32)
    p["ln2_b"] = jnp.zeros((1, d_model), jnp.float32)
    p["ff_w1"], p["ff_b1"] = lin(next(keys), d_model, ffd)
    p["ff_w2"], p["ff_b2"] = lin(next(keys), ffd, d_model)
    # TODO(synk): self.framework_weights parameter is never used in forward(); omitted.
    return p


# ------------------------------- wrapper --------------------------------------

@jax.jit
def multi_framework_processor(x, params):
    B, S, D = x.shape
    Fd = D // 2
    FW = N_FRAMEWORKS * Fd
    Cd = params["cd_w1"].shape[1]
    BS = B * S
    f32, bf16 = jnp.float32, jnp.bfloat16
    vmem_limit = _vmem_limit_bytes()

    # ---- weight prep: fuse the 5 framework projections; bf16 matmul weights
    fw_w_fused = jnp.transpose(params["fw_w"], (1, 0, 2)).reshape(D, FW).astype(bf16)
    fw_b_fused = params["fw_b"].reshape(1, FW).astype(f32)
    gate_w = params["gate_w"].astype(bf16)
    comb_w = params["comb_w"].astype(bf16)
    cd_w1 = params["cd_w1"].astype(bf16)
    cd_w2_row = params["cd_w2"].reshape(1, Cd).astype(f32)   # VPU reduction weight
    cd_b2 = params["cd_b2"].reshape(1, 1).astype(f32)

    # ---- stage 1: row-tiled framework / gate / conflict ----------------------
    # bf16 streamed input (stage 1 is HBM-bound; the kernel only uses bf16 x).
    TM = _pick_tile(BS, max_tile=1024)
    BS_pad = _round_up(BS, TM)
    x2 = x.reshape(BS, D).astype(bf16)
    if BS_pad != BS:
        x2 = jnp.pad(x2, ((0, BS_pad - BS), (0, 0)))

    row = lambda i: (i, 0)
    args1 = (x2, gate_w, params["gate_b"], fw_w_fused, fw_b_fused,
             comb_w, params["comb_b"], cd_w1, params["cd_b1"], cd_w2_row, cd_b2)
    in_specs1 = [pl.BlockSpec((TM, D), row)] + [_resident(a) for a in args1[1:]]
    out_shape1 = (
        jax.ShapeDtypeStruct((BS_pad, FW), f32),   # raw framework outputs (lane-dense)
        jax.ShapeDtypeStruct((BS_pad, D), f32),    # combined
        jax.ShapeDtypeStruct((BS_pad, 1), f32),    # conflict scores
    )
    out_specs1 = (pl.BlockSpec((TM, FW), row),
                  pl.BlockSpec((TM, D), row),
                  pl.BlockSpec((TM, 1), row))

    flops1 = 2 * BS_pad * (D * N_FRAMEWORKS + 2 * D * FW + D * Cd + Cd)
    bytes1 = (sum(a.size * a.dtype.itemsize for a in args1)
              + sum(_nbytes(o.shape, o.dtype) for o in out_shape1))
    cost1 = pl.CostEstimate(flops=int(flops1),
                            transcendentals=int(BS_pad * (N_FRAMEWORKS + Cd + 1)),
                            bytes_accessed=int(bytes1))

    fw_flat, combined_flat, conflict_flat = pl.pallas_call(
        _framework_kernel,
        out_shape=out_shape1,
        grid=(BS_pad // TM,),
        in_specs=in_specs1,
        out_specs=out_specs1,
        compiler_params=pltpu.CompilerParams(
            dimension_semantics=("parallel",),
            vmem_limit_bytes=vmem_limit),
        cost_estimate=cost1,
    )(*args1)

    combined = combined_flat[:BS].reshape(B, S, D)
    conflict = conflict_flat[:BS].reshape(B, S, 1)
    fw_all = fw_flat[:BS].reshape(B, S, N_FRAMEWORKS, Fd)
    framework_outputs = {name: fw_all[:, :, i, :]
                         for i, name in enumerate(FRAMEWORK_NAMES)}

    # ---- stage 2: consensus layer, tiled over the seq axis -------------------
    # (attention mixes rows across the batch axis, so each tile keeps full B)
    # Per-generation seq tile: roughly half the VMEM budget for f32 activations
    # (qkv 3D + ff 4D + residual/temp ~6D per row), capped at 256.
    row_bytes = 13 * D * 4
    ts_cap = (vmem_limit // 2) // max(1, B * row_bytes)
    ts_cap = max(8, min(256, (ts_cap // 8) * 8))
    TS = _pick_tile(S, max_tile=ts_cap)
    S_pad = _round_up(S, TS)
    comb_in = combined
    if S_pad != S:
        comb_in = jnp.pad(combined, ((0, 0), (0, S_pad - S), (0, 0)))

    in_w = params["in_w"].astype(bf16)
    out_w = params["out_w"].astype(bf16)
    ff_w1 = params["ff_w1"].astype(bf16)
    ff_w2 = params["ff_w2"].astype(bf16)

    args2 = (comb_in, in_w, params["in_b"], out_w, params["out_b"],
             params["ln1_g"], params["ln1_b"], params["ln2_g"], params["ln2_b"],
             ff_w1, params["ff_b1"], ff_w2, params["ff_b2"])
    seq = lambda i: (0, i, 0)
    in_specs2 = [pl.BlockSpec((B, TS, D), seq)] + [_resident(a) for a in args2[1:]]
    out_shape2 = jax.ShapeDtypeStruct((B, S_pad, D), f32)
    out_specs2 = pl.BlockSpec((B, TS, D), seq)

    R = B * S_pad
    flops2 = 2 * R * D * (3 * D + D + 8 * D) + 4 * S_pad * (B * B) * D
    bytes2 = (sum(a.size * a.dtype.itemsize for a in args2)
              + _nbytes(out_shape2.shape, out_shape2.dtype))
    cost2 = pl.CostEstimate(flops=int(flops2),
                            transcendentals=int(R * 4 * D + S_pad * N_HEADS * B * B),
                            bytes_accessed=int(bytes2))

    consensus = pl.pallas_call(
        _consensus_kernel,
        out_shape=out_shape2,
        grid=(S_pad // TS,),
        in_specs=in_specs2,
        out_specs=out_specs2,
        compiler_params=pltpu.CompilerParams(
            dimension_semantics=("parallel",),
            vmem_limit_bytes=vmem_limit),
        cost_estimate=cost2,
    )(*args2)[:, :S, :]

    # TODO(synk): symbolic_constraints is an arbitrary host-side Python callback; not a kernel op.
    return {
        "framework_outputs": framework_outputs,
        "conflict_scores": conflict,
        "consensus_output": consensus,
        "combined_output": combined,
    }


if __name__ == "__main__":
    B, S, D = 2, 8, 32  # batch, seq, d_model
    key = jax.random.PRNGKey(0)
    kx, kp = jax.random.split(key)
    x = jax.random.normal(kx, (B, S, D), jnp.float32)
    params = init_params(kp, D, conflict_dim=128)

    out = multi_framework_processor(x, params)
    jax.block_until_ready(out)

    assert out["combined_output"].shape == (B, S, D)
    assert out["consensus_output"].shape == (B, S, D)
    assert out["conflict_scores"].shape == (B, S, 1)
    assert all(v.shape == (B, S, D // 2) for v in out["framework_outputs"].values())
    assert bool(jnp.all(jnp.isfinite(out["consensus_output"])))
    assert bool(jnp.all(jnp.isfinite(out["combined_output"])))
    assert bool(jnp.all((out["conflict_scores"] >= 0) & (out["conflict_scores"] <= 1)))
    print("KERNEL_OK")
</pallas_src>

<mosaic_0001>
module attributes {stable_mosaic.version = 11 : i64} {
  func.func @_framework_kernel(%arg0: i32, %arg1: memref<8x32xbf16, #tpu.memory_space<vmem>>, %arg2: memref<32x5xbf16, #tpu.memory_space<vmem>>, %arg3: memref<1x5xf32, #tpu.memory_space<vmem>>, %arg4: memref<32x80xbf16, #tpu.memory_space<vmem>>, %arg5: memref<1x80xf32, #tpu.memory_space<vmem>>, %arg6: memref<80x32xbf16, #tpu.memory_space<vmem>>, %arg7: memref<1x32xf32, #tpu.memory_space<vmem>>, %arg8: memref<32x128xbf16, #tpu.memory_space<vmem>>, %arg9: memref<1x128xf32, #tpu.memory_space<vmem>>, %arg10: memref<1x128xf32, #tpu.memory_space<vmem>>, %arg11: memref<1x1xf32, #tpu.memory_space<vmem>>, %arg12: memref<8x80xf32, #tpu.memory_space<vmem>>, %arg13: memref<8x32xf32, #tpu.memory_space<vmem>>, %arg14: memref<8x1xf32, #tpu.memory_space<vmem>>) attributes {dimension_semantics = [#tpu.dimension_semantics<parallel>], iteration_bounds = array<i64: 2>, scalar_prefetch = 0 : i64, scratch_operands = 0 : i64, tpu.core_type = #tpu.core_type<tc>, window_params = [{transform_indices = @transform_0, window_bounds = array<i64: 8, 32>}, {pipeline_mode = #tpu.pipeline_mode<synchronous>, transform_indices = @transform_1, window_bounds = array<i64: 32, 5>}, {pipeline_mode = #tpu.pipeline_mode<synchronous>, transform_indices = @transform_2, window_bounds = array<i64: 1, 5>}, {pipeline_mode = #tpu.pipeline_mode<synchronous>, transform_indices = @transform_3, window_bounds = array<i64: 32, 80>}, {pipeline_mode = #tpu.pipeline_mode<synchronous>, transform_indices = @transform_4, window_bounds = array<i64: 1, 80>}, {pipeline_mode = #tpu.pipeline_mode<synchronous>, transform_indices = @transform_5, window_bounds = array<i64: 80, 32>}, {pipeline_mode = #tpu.pipeline_mode<synchronous>, transform_indices = @transform_6, window_bounds = array<i64: 1, 32>}, {pipeline_mode = #tpu.pipeline_mode<synchronous>, transform_indices = @transform_7, window_bounds = array<i64: 32, 128>}, {pipeline_mode = #tpu.pipeline_mode<synchronous>, transform_indices = @transform_8, window_bounds = array<i64: 1, 128>}, {pipeline_mode = #tpu.pipeline_mode<synchronous>, transform_indices = @transform_9, window_bounds = array<i64: 1, 128>}, {pipeline_mode = #tpu.pipeline_mode<synchronous>, transform_indices = @transform_10, window_bounds = array<i64: 1, 1>}, {transform_indices = @transform_11, window_bounds = array<i64: 8, 80>}, {transform_indices = @transform_12, window_bounds = array<i64: 8, 32>}, {transform_indices = @transform_13, window_bounds = array<i64: 8, 1>}]} {
    %c0 = arith.constant 0 : index
    %c0_0 = arith.constant 0 : index
    %0 = vector.load %arg1[%c0, %c0_0] : memref<8x32xbf16, #tpu.memory_space<vmem>>, vector<8x32xbf16>
    %c0_1 = arith.constant 0 : index
    %c0_2 = arith.constant 0 : index
    %1 = vector.load %arg2[%c0_1, %c0_2] : memref<32x5xbf16, #tpu.memory_space<vmem>>, vector<32x5xbf16>
    %cst = arith.constant dense<0.000000e+00> : vector<8x5xf32>
    %2 = tpu.matmul %0, %1, %cst {dimension_numbers = #tpu.dot_dimension_numbers<[1], [0], [0], [1], [0, 0, 1, 1], [], []>} : vector<8x32xbf16>, vector<32x5xbf16>, vector<8x5xf32> -> vector<8x5xf32>
    %c0_3 = arith.constant 0 : index
    %c0_4 = arith.constant 0 : index
    %3 = vector.load %arg3[%c0_3, %c0_4] : memref<1x5xf32, #tpu.memory_space<vmem>>, vector<1x5xf32>
    %4 = vector.broadcast %3 : vector<1x5xf32> to vector<8x5xf32>
    %5 = arith.addf %2, %4 : vector<8x5xf32>
    %cst_5 = arith.constant dense<0xFF800000> : vector<8xf32>
    %6 = vector.multi_reduction <maximumf>, %5, %cst_5 [1] : vector<8x5xf32> to vector<8xf32>
    %7 = vector.shape_cast %6 : vector<8xf32> to vector<8x1xf32>
    %8 = vector.broadcast %7 : vector<8x1xf32> to vector<8x5xf32>
    %9 = arith.subf %5, %8 : vector<8x5xf32>
    %10 = math.exp %9 : vector<8x5xf32>
    %cst_6 = arith.constant dense<0.000000e+00> : vector<8xf32>
    %11 = vector.multi_reduction <add>, %10, %cst_6 [1] : vector<8x5xf32> to vector<8xf32>
    %12 = vector.shape_cast %11 : vector<8xf32> to vector<8x1xf32>
    %13 = vector.broadcast %12 : vector<8x1xf32> to vector<8x5xf32>
    %14 = arith.divf %10, %13 : vector<8x5xf32>
    %c0_7 = arith.constant 0 : index
    %c0_8 = arith.constant 0 : index
    %15 = vector.load %arg4[%c0_7, %c0_8] : memref<32x80xbf16, #tpu.memory_space<vmem>>, vector<32x80xbf16>
    %cst_9 = arith.constant dense<0.000000e+00> : vector<8x80xf32>
    %16 = tpu.matmul %0, %15, %cst_9 {dimension_numbers = #tpu.dot_dimension_numbers<[1], [0], [0], [1], [0, 0, 1, 1], [], []>} : vector<8x32xbf16>, vector<32x80xbf16>, vector<8x80xf32> -> vector<8x80xf32>
    %c0_10 = arith.constant 0 : index
    %c0_11 = arith.constant 0 : index
    %17 = vector.load %arg5[%c0_10, %c0_11] : memref<1x80xf32, #tpu.memory_space<vmem>>, vector<1x80xf32>
    %18 = vector.broadcast %17 : vector<1x80xf32> to vector<8x80xf32>
    %19 = arith.addf %16, %18 : vector<8x80xf32>
    %c0_12 = arith.constant 0 : index
    %c0_13 = arith.constant 0 : index
    %20 = vector.load %arg12[%c0_12, %c0_13] : memref<8x80xf32, #tpu.memory_space<vmem>>, vector<8x80xf32>
    tpu.vector_store %arg12[%c0_12, %c0_13], %19 {strides = array<i32>} : memref<8x80xf32, #tpu.memory_space<vmem>>, vector<8x80xf32>,
    %21 = tpu.iota {dimensions = array<i32: 1>} : vector<8x80xi32>
    %c16_i32 = arith.constant 16 : i32
    %22 = vector.broadcast %c16_i32 : i32 to vector<8x80xi32>
    %23 = arith.cmpi slt, %21, %22 : vector<8x80xi32>
    %24 = vector.extract_strided_slice %14 {offsets = [0, 0], sizes = [8, 1], strides = [1, 1]} : vector<8x5xf32> to vector<8x1xf32>
    %c32_i32 = arith.constant 32 : i32
    %25 = vector.broadcast %c32_i32 : i32 to vector<8x80xi32>
    %26 = arith.cmpi slt, %21, %25 : vector<8x80xi32>
    %27 = vector.extract_strided_slice %14 {offsets = [0, 1], sizes = [8, 1], strides = [1, 1]} : vector<8x5xf32> to vector<8x1xf32>
    %c48_i32 = arith.constant 48 : i32
    %28 = vector.broadcast %c48_i32 : i32 to vector<8x80xi32>
    %29 = arith.cmpi slt, %21, %28 : vector<8x80xi32>
    %30 = vector.extract_strided_slice %14 {offsets = [0, 2], sizes = [8, 1], strides = [1, 1]} : vector<8x5xf32> to vector<8x1xf32>
    %c64_i32 = arith.constant 64 : i32
    %31 = vector.broadcast %c64_i32 : i32 to vector<8x80xi32>
    %32 = arith.cmpi slt, %21, %31 : vector<8x80xi32>
    %33 = vector.extract_strided_slice %14 {offsets = [0, 3], sizes = [8, 1], strides = [1, 1]} : vector<8x5xf32> to vector<8x1xf32>
    %34 = vector.extract_strided_slice %14 {offsets = [0, 4], sizes = [8, 1], strides = [1, 1]} : vector<8x5xf32> to vector<8x1xf32>
    %35 = vector.shape_cast %33 : vector<8x1xf32> to vector<8x1xf32>
    %36 = vector.broadcast %35 : vector<8x1xf32> to vector<8x80xf32>
    %37 = vector.shape_cast %34 : vector<8x1xf32> to vector<8x1xf32>
    %38 = vector.broadcast %37 : vector<8x1xf32> to vector<8x80xf32>
    %39 = arith.select %32, %36, %38 : vector<8x80xi1>, vector<8x80xf32>
    %40 = vector.shape_cast %30 : vector<8x1xf32> to vector<8x1xf32>
    %41 = vector.broadcast %40 : vector<8x1xf32> to vector<8x80xf32>
    %42 = arith.select %29, %41, %39 : vector<8x80xi1>, vector<8x80xf32>
    %43 = vector.shape_cast %27 : vector<8x1xf32> to vector<8x1xf32>
    %44 = vector.broadcast %43 : vector<8x1xf32> to vector<8x80xf32>
    %45 = arith.select %26, %44, %42 : vector<8x80xi1>, vector<8x80xf32>
    %46 = vector.shape_cast %24 : vector<8x1xf32> to vector<8x1xf32>
    %47 = vector.broadcast %46 : vector<8x1xf32> to vector<8x80xf32>
    %48 = arith.select %23, %47, %45 : vector<8x80xi1>, vector<8x80xf32>
    %49 = arith.mulf %19, %48 : vector<8x80xf32>
    %50 = arith.truncf %49 : vector<8x80xf32> to vector<8x80xbf16>
    %c0_14 = arith.constant 0 : index
    %c0_15 = arith.constant 0 : index
    %51 = vector.load %arg6[%c0_14, %c0_15] : memref<80x32xbf16, #tpu.memory_space<vmem>>, vector<80x32xbf16>
    %cst_16 = arith.constant dense<0.000000e+00> : vector<8x32xf32>
    %52 = tpu.matmul %50, %51, %cst_16 {dimension_numbers = #tpu.dot_dimension_numbers<[1], [0], [0], [1], [0, 0, 1, 1], [], []>} : vector<8x80xbf16>, vector<80x32xbf16>, vector<8x32xf32> -> vector<8x32xf32>
    %c0_17 = arith.constant 0 : index
    %c0_18 = arith.constant 0 : index
    %53 = vector.load %arg7[%c0_17, %c0_18] : memref<1x32xf32, #tpu.memory_space<vmem>>, vector<1x32xf32>
    %54 = vector.broadcast %53 : vector<1x32xf32> to vector<8x32xf32>
    %55 = arith.addf %52, %54 : vector<8x32xf32>
    %c0_19 = arith.constant 0 : index
    %c0_20 = arith.constant 0 : index
    %56 = vector.load %arg13[%c0_19, %c0_20] : memref<8x32xf32, #tpu.memory_space<vmem>>, vector<8x32xf32>
    tpu.vector_store %arg13[%c0_19, %c0_20], %55 {strides = array<i32>} : memref<8x32xf32, #tpu.memory_space<vmem>>, vector<8x32xf32>,
    %57 = arith.truncf %55 : vector<8x32xf32> to vector<8x32xbf16>
    %c0_21 = arith.constant 0 : index
    %c0_22 = arith.constant 0 : index
    %58 = vector.load %arg8[%c0_21, %c0_22] : memref<32x128xbf16, #tpu.memory_space<vmem>>, vector<32x128xbf16>
    %cst_23 = arith.constant dense<0.000000e+00> : vector<8x128xf32>
    %59 = tpu.matmul %57, %58, %cst_23 {dimension_numbers = #tpu.dot_dimension_numbers<[1], [0], [0], [1], [0, 0, 1, 1], [], []>} : vector<8x32xbf16>, vector<32x128xbf16>, vector<8x128xf32> -> vector<8x128xf32>
    %c0_24 = arith.constant 0 : index
    %c0_25 = arith.constant 0 : index
    %60 = vector.load %arg9[%c0_24, %c0_25] : memref<1x128xf32, #tpu.memory_space<vmem>>, vector<1x128xf32>
    %61 = vector.broadcast %60 : vector<1x128xf32> to vector<8x128xf32>
    %62 = arith.addf %59, %61 : vector<8x128xf32>
    %cst_26 = arith.constant 5.000000e-01 : f32
    %63 = vector.broadcast %cst_26 : f32 to vector<8x128xf32>
    %64 = arith.mulf %63, %62 : vector<8x128xf32>
    %cst_27 = arith.constant 0.707106769 : f32
    %65 = vector.broadcast %cst_27 : f32 to vector<8x128xf32>
    %66 = arith.mulf %62, %65 : vector<8x128xf32>
    %67 = math.erf %66 : vector<8x128xf32>
    %cst_28 = arith.constant 1.000000e+00 : f32
    %68 = vector.broadcast %cst_28 : f32 to vector<8x128xf32>
    %69 = arith.addf %68, %67 : vector<8x128xf32>
    %70 = arith.mulf %64, %69 : vector<8x128xf32>
    %c0_29 = arith.constant 0 : index
    %c0_30 = arith.constant 0 : index
    %71 = vector.load %arg10[%c0_29, %c0_30] : memref<1x128xf32, #tpu.memory_space<vmem>>, vector<1x128xf32>
    %72 = vector.broadcast %71 : vector<1x128xf32> to vector<8x128xf32>
    %73 = arith.mulf %70, %72 : vector<8x128xf32>
    %cst_31 = arith.constant dense<0.000000e+00> : vector<8xf32>
    %74 = vector.multi_reduction <add>, %73, %cst_31 [1] : vector<8x128xf32> to vector<8xf32>
    %75 = vector.shape_cast %74 : vector<8xf32> to vector<8x1xf32>
    %c0_32 = arith.constant 0 : index
    %c0_33 = arith.constant 0 : index
    %76 = vector.load %arg11[%c0_32, %c0_33] : memref<1x1xf32, #tpu.memory_space<vmem>>, vector<1x1xf32>
    %77 = vector.broadcast %76 : vector<1x1xf32> to vector<8x1xf32>
    %78 = arith.addf %75, %77 : vector<8x1xf32>
    %79 = arith.negf %78 : vector<8x1xf32>
    %80 = math.exp %79 : vector<8x1xf32>
    %cst_34 = arith.constant 1.000000e+00 : f32
    %81 = vector.broadcast %cst_34 : f32 to vector<8x1xf32>
    %82 = arith.addf %81, %80 : vector<8x1xf32>
    %83 = arith.divf %81, %82 : vector<8x1xf32>
    %c0_35 = arith.constant 0 : index
    %c0_36 = arith.constant 0 : index
    %84 = vector.load %arg14[%c0_35, %c0_36] : memref<8x1xf32, #tpu.memory_space<vmem>>, vector<8x1xf32>
    tpu.vector_store %arg14[%c0_35, %c0_36], %83 {strides = array<i32>} : memref<8x1xf32, #tpu.memory_space<vmem>>, vector<8x1xf32>,
    return
  }
  func.func @transform_0(%arg0: i32) -> (i32, i32) {
    %c0_i32 = arith.constant 0 : i32
    %c0_i32_0 = arith.constant 0 : i32
    return %arg0, %c0_i32 : i32, i32
  }
  func.func @transform_1(%arg0: i32) -> (i32, i32) {
    %c0_i32 = arith.constant 0 : i32
    %c0_i32_0 = arith.constant 0 : i32
    %c0_i32_1 = arith.constant 0 : i32
    return %c0_i32, %c0_i32_0 : i32, i32
  }
  func.func @transform_2(%arg0: i32) -> (i32, i32) {
    %c0_i32 = arith.constant 0 : i32
    %c0_i32_0 = arith.constant 0 : i32
    %c0_i32_1 = arith.constant 0 : i32
    return %c0_i32, %c0_i32_0 : i32, i32
  }
  func.func @transform_3(%arg0: i32) -> (i32, i32) {
    %c0_i32 = arith.constant 0 : i32
    %c0_i32_0 = arith.constant 0 : i32
    %c0_i32_1 = arith.constant 0 : i32
    return %c0_i32, %c0_i32_0 : i32, i32
  }
  func.func @transform_4(%arg0: i32) -> (i32, i32) {
    %c0_i32 = arith.constant 0 : i32
    %c0_i32_0 = arith.constant 0 : i32
    %c0_i32_1 = arith.constant 0 : i32
    return %c0_i32, %c0_i32_0 : i32, i32
  }
  func.func @transform_5(%arg0: i32) -> (i32, i32) {
    %c0_i32 = arith.constant 0 : i32
    %c0_i32_0 = arith.constant 0 : i32
    %c0_i32_1 = arith.constant 0 : i32
    return %c0_i32, %c0_i32_0 : i32, i32
  }
  func.func @transform_6(%arg0: i32) -> (i32, i32) {
    %c0_i32 = arith.constant 0 : i32
    %c0_i32_0 = arith.constant 0 : i32
    %c0_i32_1 = arith.constant 0 : i32
    return %c0_i32, %c0_i32_0 : i32, i32
  }
  func.func @transform_7(%arg0: i32) -> (i32, i32) {
    %c0_i32 = arith.constant 0 : i32
    %c0_i32_0 = arith.constant 0 : i32
    %c0_i32_1 = arith.constant 0 : i32
    return %c0_i32, %c0_i32_0 : i32, i32
  }
  func.func @transform_8(%arg0: i32) -> (i32, i32) {
    %c0_i32 = arith.constant 0 : i32
    %c0_i32_0 = arith.constant 0 : i32
    %c0_i32_1 = arith.constant 0 : i32
    return %c0_i32, %c0_i32_0 : i32, i32
  }
  func.func @transform_9(%arg0: i32) -> (i32, i32) {
    %c0_i32 = arith.constant 0 : i32
    %c0_i32_0 = arith.constant 0 : i32
    %c0_i32_1 = arith.constant 0 : i32
    return %c0_i32, %c0_i32_0 : i32, i32
  }
  func.func @transform_10(%arg0: i32) -> (i32, i32) {
    %c0_i32 = arith.constant 0 : i32
    %c0_i32_0 = arith.constant 0 : i32
    %c0_i32_1 = arith.constant 0 : i32
    return %c0_i32, %c0_i32_0 : i32, i32
  }
  func.func @transform_11(%arg0: i32) -> (i32, i32) {
    %c0_i32 = arith.constant 0 : i32
    %c0_i32_0 = arith.constant 0 : i32
    return %arg0, %c0_i32 : i32, i32
  }
  func.func @transform_12(%arg0: i32) -> (i32, i32) {
    %c0_i32 = arith.constant 0 : i32
    %c0_i32_0 = arith.constant 0 : i32
    return %arg0, %c0_i32 : i32, i32
  }
  func.func @transform_13(%arg0: i32) -> (i32, i32) {
    %c0_i32 = arith.constant 0 : i32
    %c0_i32_0 = arith.constant 0 : i32
    return %arg0, %c0_i32 : i32, i32
  }
}

module attributes {stable_mosaic.version = 11 : i64} {
  func.func @_consensus_kernel(%arg0: i32, %arg1: memref<2x8x32xf32, #tpu.memory_space<vmem>>, %arg2: memref<32x96xbf16, #tpu.memory_space<vmem>>, %arg3: memref<1x96xf32, #tpu.memory_space<vmem>>, %arg4: memref<32x32xbf16, #tpu.memory_space<vmem>>, %arg5: memref<1x32xf32, #tpu.memory_space<vmem>>, %arg6: memref<1x32xf32, #tpu.memory_space<vmem>>, %arg7: memref<1x32xf32, #tpu.memory_space<vmem>>, %arg8: memref<1x32xf32, #tpu.memory_space<vmem>>, %arg9: memref<1x32xf32, #tpu.memory_space<vmem>>, %arg10: memref<32x128xbf16, #tpu.memory_space<vmem>>, %arg11: memref<1x128xf32, #tpu.memory_space<vmem>>, %arg12: memref<128x32xbf16, #tpu.memory_space<vmem>>, %arg13: memref<1x32xf32, #tpu.memory_space<vmem>>, %arg14: memref<2x8x32xf32, #tpu.memory_space<vmem>>) attributes {dimension_semantics = [#tpu.dimension_semantics<parallel>], iteration_bounds = array<i64: 1>, scalar_prefetch = 0 : i64, scratch_operands = 0 : i64, tpu.core_type = #tpu.core_type<tc>, window_params = [{transform_indices = @transform_0, window_bounds = array<i64: 2, 8, 32>}, {pipeline_mode = #tpu.pipeline_mode<synchronous>, transform_indices = @transform_1, window_bounds = array<i64: 32, 96>}, {pipeline_mode = #tpu.pipeline_mode<synchronous>, transform_indices = @transform_2, window_bounds = array<i64: 1, 96>}, {pipeline_mode = #tpu.pipeline_mode<synchronous>, transform_indices = @transform_3, window_bounds = array<i64: 32, 32>}, {pipeline_mode = #tpu.pipeline_mode<synchronous>, transform_indices = @transform_4, window_bounds = array<i64: 1, 32>}, {pipeline_mode = #tpu.pipeline_mode<synchronous>, transform_indices = @transform_5, window_bounds = array<i64: 1, 32>}, {pipeline_mode = #tpu.pipeline_mode<synchronous>, transform_indices = @transform_6, window_bounds = array<i64: 1, 32>}, {pipeline_mode = #tpu.pipeline_mode<synchronous>, transform_indices = @transform_7, window_bounds = array<i64: 1, 32>}, {pipeline_mode = #tpu.pipeline_mode<synchronous>, transform_indices = @transform_8, window_bounds = array<i64: 1, 32>}, {pipeline_mode = #tpu.pipeline_mode<synchronous>, transform_indices = @transform_9, window_bounds = array<i64: 32, 128>}, {pipeline_mode = #tpu.pipeline_mode<synchronous>, transform_indices = @transform_10, window_bounds = array<i64: 1, 128>}, {pipeline_mode = #tpu.pipeline_mode<synchronous>, transform_indices = @transform_11, window_bounds = array<i64: 128, 32>}, {pipeline_mode = #tpu.pipeline_mode<synchronous>, transform_indices = @transform_12, window_bounds = array<i64: 1, 32>}, {transform_indices = @transform_13, window_bounds = array<i64: 2, 8, 32>}]} {
    %c0 = arith.constant 0 : index
    %c0_0 = arith.constant 0 : index
    %c0_1 = arith.constant 0 : index
    %0 = vector.load %arg1[%c0, %c0_0, %c0_1] : memref<2x8x32xf32, #tpu.memory_space<vmem>>, vector<2x8x32xf32>
    %1 = vector.shape_cast %0 : vector<2x8x32xf32> to vector<16x32xf32>
    %2 = arith.truncf %1 : vector<16x32xf32> to vector<16x32xbf16>
    %c0_2 = arith.constant 0 : index
    %c0_3 = arith.constant 0 : index
    %3 = vector.load %arg2[%c0_2, %c0_3] : memref<32x96xbf16, #tpu.memory_space<vmem>>, vector<32x96xbf16>
    %cst = arith.constant dense<0.000000e+00> : vector<16x96xf32>
    %4 = tpu.matmul %2, %3, %cst {dimension_numbers = #tpu.dot_dimension_numbers<[1], [0], [0], [1], [0, 0, 1, 1], [], []>} : vector<16x32xbf16>, vector<32x96xbf16>, vector<16x96xf32> -> vector<16x96xf32>
    %c0_4 = arith.constant 0 : index
    %c0_5 = arith.constant 0 : index
    %5 = vector.load %arg3[%c0_4, %c0_5] : memref<1x96xf32, #tpu.memory_space<vmem>>, vector<1x96xf32>
    %6 = vector.broadcast %5 : vector<1x96xf32> to vector<16x96xf32>
    %7 = arith.addf %4, %6 : vector<16x96xf32>
    %8 = vector.extract_strided_slice %7 {offsets = [0, 0], sizes = [16, 32], strides = [1, 1]} : vector<16x96xf32> to vector<16x32xf32>
    %cst_6 = arith.constant 0.353553385 : f32
    %9 = vector.broadcast %cst_6 : f32 to vector<16x32xf32>
    %10 = arith.mulf %8, %9 : vector<16x32xf32>
    %11 = vector.shape_cast %10 : vector<16x32xf32> to vector<2x8x32xf32>
    %12 = vector.extract_strided_slice %7 {offsets = [0, 32], sizes = [16, 32], strides = [1, 1]} : vector<16x96xf32> to vector<16x32xf32>
    %13 = vector.shape_cast %12 : vector<16x32xf32> to vector<2x8x32xf32>
    %14 = vector.extract_strided_slice %7 {offsets = [0, 64], sizes = [16, 32], strides = [1, 1]} : vector<16x96xf32> to vector<16x32xf32>
    %15 = vector.shape_cast %14 : vector<16x32xf32> to vector<2x8x32xf32>
    %16 = vector.extract_strided_slice %11 {offsets = [0, 0, 0], sizes = [1, 8, 8], strides = [1, 1, 1]} : vector<2x8x32xf32> to vector<1x8x8xf32>
    %17 = vector.shape_cast %16 : vector<1x8x8xf32> to vector<8x8xf32>
    %18 = vector.extract_strided_slice %13 {offsets = [0, 0, 0], sizes = [1, 8, 8], strides = [1, 1, 1]} : vector<2x8x32xf32> to vector<1x8x8xf32>
    %19 = vector.shape_cast %18 : vector<1x8x8xf32> to vector<8x8xf32>
    %20 = arith.mulf %17, %19 : vector<8x8xf32>
    %cst_7 = arith.constant dense<0.000000e+00> : vector<8xf32>
    %21 = vector.multi_reduction <add>, %20, %cst_7 [1] : vector<8x8xf32> to vector<8xf32>
    %22 = vector.shape_cast %21 : vector<8xf32> to vector<8x1xf32>
    %23 = vector.extract_strided_slice %13 {offsets = [1, 0, 0], sizes = [1, 8, 8], strides = [1, 1, 1]} : vector<2x8x32xf32> to vector<1x8x8xf32>
    %24 = vector.shape_cast %23 : vector<1x8x8xf32> to vector<8x8xf32>
    %25 = arith.mulf %17, %24 : vector<8x8xf32>
    %cst_8 = arith.constant dense<0.000000e+00> : vector<8xf32>
    %26 = vector.multi_reduction <add>, %25, %cst_8 [1] : vector<8x8xf32> to vector<8xf32>
    %27 = vector.shape_cast %26 : vector<8xf32> to vector<8x1xf32>
    %28 = arith.maximumf %22, %27 : vector<8x1xf32>
    %29 = arith.subf %22, %28 : vector<8x1xf32>
    %30 = math.exp %29 : vector<8x1xf32>
    %31 = arith.subf %27, %28 : vector<8x1xf32>
    %32 = math.exp %31 : vector<8x1xf32>
    %33 = arith.addf %30, %32 : vector<8x1xf32>
    %34 = tpu.reciprocal %33 {approx = true} : vector<8x1xf32> -> vector<8x1xf32>
    %35 = arith.mulf %30, %34 : vector<8x1xf32>
    %36 = vector.extract_strided_slice %15 {offsets = [0, 0, 0], sizes = [1, 8, 8], strides = [1, 1, 1]} : vector<2x8x32xf32> to vector<1x8x8xf32>
    %37 = vector.shape_cast %36 : vector<1x8x8xf32> to vector<8x8xf32>
    %38 = vector.broadcast %35 : vector<8x1xf32> to vector<8x8xf32>
    %39 = arith.mulf %38, %37 : vector<8x8xf32>
    %40 = arith.mulf %32, %34 : vector<8x1xf32>
    %41 = vector.extract_strided_slice %15 {offsets = [1, 0, 0], sizes = [1, 8, 8], strides = [1, 1, 1]} : vector<2x8x32xf32> to vector<1x8x8xf32>
    %42 = vector.shape_cast %41 : vector<1x8x8xf32> to vector<8x8xf32>
    %43 = vector.broadcast %40 : vector<8x1xf32> to vector<8x8xf32>
    %44 = arith.mulf %43, %42 : vector<8x8xf32>
    %45 = arith.addf %39, %44 : vector<8x8xf32>
    %46 = vector.extract_strided_slice %11 {offsets = [0, 0, 8], sizes = [1, 8, 8], strides = [1, 1, 1]} : vector<2x8x32xf32> to vector<1x8x8xf32>
    %47 = vector.shape_cast %46 : vector<1x8x8xf32> to vector<8x8xf32>
    %48 = vector.extract_strided_slice %13 {offsets = [0, 0, 8], sizes = [1, 8, 8], strides = [1, 1, 1]} : vector<2x8x32xf32> to vector<1x8x8xf32>
    %49 = vector.shape_cast %48 : vector<1x8x8xf32> to vector<8x8xf32>
    %50 = arith.mulf %47, %49 : vector<8x8xf32>
    %cst_9 = arith.constant dense<0.000000e+00> : vector<8xf32>
    %51 = vector.multi_reduction <add>, %50, %cst_9 [1] : vector<8x8xf32> to vector<8xf32>
    %52 = vector.shape_cast %51 : vector<8xf32> to vector<8x1xf32>
    %53 = vector.extract_strided_slice %13 {offsets = [1, 0, 8], sizes = [1, 8, 8], strides = [1, 1, 1]} : vector<2x8x32xf32> to vector<1x8x8xf32>
    %54 = vector.shape_cast %53 : vector<1x8x8xf32> to vector<8x8xf32>
    %55 = arith.mulf %47, %54 : vector<8x8xf32>
    %cst_10 = arith.constant dense<0.000000e+00> : vector<8xf32>
    %56 = vector.multi_reduction <add>, %55, %cst_10 [1] : vector<8x8xf32> to vector<8xf32>
    %57 = vector.shape_cast %56 : vector<8xf32> to vector<8x1xf32>
    %58 = arith.maximumf %52, %57 : vector<8x1xf32>
    %59 = arith.subf %52, %58 : vector<8x1xf32>
    %60 = math.exp %59 : vector<8x1xf32>
    %61 = arith.subf %57, %58 : vector<8x1xf32>
    %62 = math.exp %61 : vector<8x1xf32>
    %63 = arith.addf %60, %62 : vector<8x1xf32>
    %64 = tpu.reciprocal %63 {approx = true} : vector<8x1xf32> -> vector<8x1xf32>
    %65 = arith.mulf %60, %64 : vector<8x1xf32>
    %66 = vector.extract_strided_slice %15 {offsets = [0, 0, 8], sizes = [1, 8, 8], strides = [1, 1, 1]} : vector<2x8x32xf32> to vector<1x8x8xf32>
    %67 = vector.shape_cast %66 : vector<1x8x8xf32> to vector<8x8xf32>
    %68 = vector.broadcast %65 : vector<8x1xf32> to vector<8x8xf32>
    %69 = arith.mulf %68, %67 : vector<8x8xf32>
    %70 = arith.mulf %62, %64 : vector<8x1xf32>
    %71 = vector.extract_strided_slice %15 {offsets = [1, 0, 8], sizes = [1, 8, 8], strides = [1, 1, 1]} : vector<2x8x32xf32> to vector<1x8x8xf32>
    %72 = vector.shape_cast %71 : vector<1x8x8xf32> to vector<8x8xf32>
    %73 = vector.broadcast %70 : vector<8x1xf32> to vector<8x8xf32>
    %74 = arith.mulf %73, %72 : vector<8x8xf32>
    %75 = arith.addf %69, %74 : vector<8x8xf32>
    %76 = vector.extract_strided_slice %11 {offsets = [0, 0, 16], sizes = [1, 8, 8], strides = [1, 1, 1]} : vector<2x8x32xf32> to vector<1x8x8xf32>
    %77 = vector.shape_cast %76 : vector<1x8x8xf32> to vector<8x8xf32>
    %78 = vector.extract_strided_slice %13 {offsets = [0, 0, 16], sizes = [1, 8, 8], strides = [1, 1, 1]} : vector<2x8x32xf32> to vector<1x8x8xf32>
    %79 = vector.shape_cast %78 : vector<1x8x8xf32> to vector<8x8xf32>
    %80 = arith.mulf %77, %79 : vector<8x8xf32>
    %cst_11 = arith.constant dense<0.000000e+00> : vector<8xf32>
    %81 = vector.multi_reduction <add>, %80, %cst_11 [1] : vector<8x8xf32> to vector<8xf32>
    %82 = vector.shape_cast %81 : vector<8xf32> to vector<8x1xf32>
    %83 = vector.extract_strided_slice %13 {offsets = [1, 0, 16], sizes = [1, 8, 8], strides = [1, 1, 1]} : vector<2x8x32xf32> to vector<1x8x8xf32>
    %84 = vector.shape_cast %83 : vector<1x8x8xf32> to vector<8x8xf32>
    %85 = arith.mulf %77, %84 : vector<8x8xf32>
    %cst_12 = arith.constant dense<0.000000e+00> : vector<8xf32>
    %86 = vector.multi_reduction <add>, %85, %cst_12 [1] : vector<8x8xf32> to vector<8xf32>
    %87 = vector.shape_cast %86 : vector<8xf32> to vector<8x1xf32>
    %88 = arith.maximumf %82, %87 : vector<8x1xf32>
    %89 = arith.subf %82, %88 : vector<8x1xf32>
    %90 = math.exp %89 : vector<8x1xf32>
    %91 = arith.subf %87, %88 : vector<8x1xf32>
    %92 = math.exp %91 : vector<8x1xf32>
    %93 = arith.addf %90, %92 : vector<8x1xf32>
    %94 = tpu.reciprocal %93 {approx = true} : vector<8x1xf32> -> vector<8x1xf32>
    %95 = arith.mulf %90, %94 : vector<8x1xf32>
    %96 = vector.extract_strided_slice %15 {offsets = [0, 0, 16], sizes = [1, 8, 8], strides = [1, 1, 1]} : vector<2x8x32xf32> to vector<1x8x8xf32>
    %97 = vector.shape_cast %96 : vector<1x8x8xf32> to vector<8x8xf32>
    %98 = vector.broadcast %95 : vector<8x1xf32> to vector<8x8xf32>
    %99 = arith.mulf %98, %97 : vector<8x8xf32>
    %100 = arith.mulf %92, %94 : vector<8x1xf32>
    %101 = vector.extract_strided_slice %15 {offsets = [1, 0, 16], sizes = [1, 8, 8], strides = [1, 1, 1]} : vector<2x8x32xf32> to vector<1x8x8xf32>
    %102 = vector.shape_cast %101 : vector<1x8x8xf32> to vector<8x8xf32>
    %103 = vector.broadcast %100 : vector<8x1xf32> to vector<8x8xf32>
    %104 = arith.mulf %103, %102 : vector<8x8xf32>
    %105 = arith.addf %99, %104 : vector<8x8xf32>
    %106 = vector.extract_strided_slice %11 {offsets = [0, 0, 24], sizes = [1, 8, 8], strides = [1, 1, 1]} : vector<2x8x32xf32> to vector<1x8x8xf32>
    %107 = vector.shape_cast %106 : vector<1x8x8xf32> to vector<8x8xf32>
    %108 = vector.extract_strided_slice %13 {offsets = [0, 0, 24], sizes = [1, 8, 8], strides = [1, 1, 1]} : vector<2x8x32xf32> to vector<1x8x8xf32>
    %109 = vector.shape_cast %108 : vector<1x8x8xf32> to vector<8x8xf32>
    %110 = arith.mulf %107, %109 : vector<8x8xf32>
    %cst_13 = arith.constant dense<0.000000e+00> : vector<8xf32>
    %111 = vector.multi_reduction <add>, %110, %cst_13 [1] : vector<8x8xf32> to vector<8xf32>
    %112 = vector.shape_cast %111 : vector<8xf32> to vector<8x1xf32>
    %113 = vector.extract_strided_slice %13 {offsets = [1, 0, 24], sizes = [1, 8, 8], strides = [1, 1, 1]} : vector<2x8x32xf32> to vector<1x8x8xf32>
    %114 = vector.shape_cast %113 : vector<1x8x8xf32> to vector<8x8xf32>
    %115 = arith.mulf %107, %114 : vector<8x8xf32>
    %cst_14 = arith.constant dense<0.000000e+00> : vector<8xf32>
    %116 = vector.multi_reduction <add>, %115, %cst_14 [1] : vector<8x8xf32> to vector<8xf32>
    %117 = vector.shape_cast %116 : vector<8xf32> to vector<8x1xf32>
    %118 = arith.maximumf %112, %117 : vector<8x1xf32>
    %119 = arith.subf %112, %118 : vector<8x1xf32>
    %120 = math.exp %119 : vector<8x1xf32>
    %121 = arith.subf %117, %118 : vector<8x1xf32>
    %122 = math.exp %121 : vector<8x1xf32>
    %123 = arith.addf %120, %122 : vector<8x1xf32>
    %124 = tpu.reciprocal %123 {approx = true} : vector<8x1xf32> -> vector<8x1xf32>
    %125 = arith.mulf %120, %124 : vector<8x1xf32>
    %126 = vector.extract_strided_slice %15 {offsets = [0, 0, 24], sizes = [1, 8, 8], strides = [1, 1, 1]} : vector<2x8x32xf32> to vector<1x8x8xf32>
    %127 = vector.shape_cast %126 : vector<1x8x8xf32> to vector<8x8xf32>
    %128 = vector.broadcast %125 : vector<8x1xf32> to vector<8x8xf32>
    %129 = arith.mulf %128, %127 : vector<8x8xf32>
    %130 = arith.mulf %122, %124 : vector<8x1xf32>
    %131 = vector.extract_strided_slice %15 {offsets = [1, 0, 24], sizes = [1, 8, 8], strides = [1, 1, 1]} : vector<2x8x32xf32> to vector<1x8x8xf32>
    %132 = vector.shape_cast %131 : vector<1x8x8xf32> to vector<8x8xf32>
    %133 = vector.broadcast %130 : vector<8x1xf32> to vector<8x8xf32>
    %134 = arith.mulf %133, %132 : vector<8x8xf32>
    %135 = arith.addf %129, %134 : vector<8x8xf32>
    %136 = arith.truncf %45 : vector<8x8xf32> to vector<8x8xbf16>
    %c0_15 = arith.constant 0 : index
    %c0_16 = arith.constant 0 : index
    %137 = vector.load %arg4[%c0_15, %c0_16] : memref<32x32xbf16, #tpu.memory_space<vmem>>, vector<8x32xbf16>
    %cst_17 = arith.constant dense<0.000000e+00> : vector<8x32xf32>
    %138 = tpu.matmul %136, %137, %cst_17 {dimension_numbers = #tpu.dot_dimension_numbers<[1], [0], [0], [1], [0, 0, 1, 1], [], []>} : vector<8x8xbf16>, vector<8x32xbf16>, vector<8x32xf32> -> vector<8x32xf32>
    %139 = arith.truncf %75 : vector<8x8xf32> to vector<8x8xbf16>
    %c8 = arith.constant 8 : index
    %c0_18 = arith.constant 0 : index
    %140 = vector.load %arg4[%c8, %c0_18] : memref<32x32xbf16, #tpu.memory_space<vmem>>, vector<8x32xbf16>
    %cst_19 = arith.constant dense<0.000000e+00> : vector<8x32xf32>
    %141 = tpu.matmul %139, %140, %cst_19 {dimension_numbers = #tpu.dot_dimension_numbers<[1], [0], [0], [1], [0, 0, 1, 1], [], []>} : vector<8x8xbf16>, vector<8x32xbf16>, vector<8x32xf32> -> vector<8x32xf32>
    %142 = arith.addf %138, %141 : vector<8x32xf32>
    %143 = arith.truncf %105 : vector<8x8xf32> to vector<8x8xbf16>
    %c16 = arith.constant 16 : index
    %c0_20 = arith.constant 0 : index
    %144 = vector.load %arg4[%c16, %c0_20] : memref<32x32xbf16, #tpu.memory_space<vmem>>, vector<8x32xbf16>
    %cst_21 = arith.constant dense<0.000000e+00> : vector<8x32xf32>
    %145 = tpu.matmul %143, %144, %cst_21 {dimension_numbers = #tpu.dot_dimension_numbers<[1], [0], [0], [1], [0, 0, 1, 1], [], []>} : vector<8x8xbf16>, vector<8x32xbf16>, vector<8x32xf32> -> vector<8x32xf32>
    %146 = arith.addf %142, %145 : vector<8x32xf32>
    %147 = arith.truncf %135 : vector<8x8xf32> to vector<8x8xbf16>
    %c24 = arith.constant 24 : index
    %c0_22 = arith.constant 0 : index
    %148 = vector.load %arg4[%c24, %c0_22] : memref<32x32xbf16, #tpu.memory_space<vmem>>, vector<8x32xbf16>
    %cst_23 = arith.constant dense<0.000000e+00> : vector<8x32xf32>
    %149 = tpu.matmul %147, %148, %cst_23 {dimension_numbers = #tpu.dot_dimension_numbers<[1], [0], [0], [1], [0, 0, 1, 1], [], []>} : vector<8x8xbf16>, vector<8x32xbf16>, vector<8x32xf32> -> vector<8x32xf32>
    %150 = arith.addf %146, %149 : vector<8x32xf32>
    %c0_24 = arith.constant 0 : index
    %c0_25 = arith.constant 0 : index
    %151 = vector.load %arg5[%c0_24, %c0_25] : memref<1x32xf32, #tpu.memory_space<vmem>>, vector<1x32xf32>
    %152 = vector.broadcast %151 : vector<1x32xf32> to vector<8x32xf32>
    %153 = arith.addf %150, %152 : vector<8x32xf32>
    %154 = vector.extract_strided_slice %11 {offsets = [1, 0, 0], sizes = [1, 8, 8], strides = [1, 1, 1]} : vector<2x8x32xf32> to vector<1x8x8xf32>
    %155 = vector.shape_cast %154 : vector<1x8x8xf32> to vector<8x8xf32>
    %156 = vector.extract_strided_slice %13 {offsets = [0, 0, 0], sizes = [1, 8, 8], strides = [1, 1, 1]} : vector<2x8x32xf32> to vector<1x8x8xf32>
    %157 = vector.shape_cast %156 : vector<1x8x8xf32> to vector<8x8xf32>
    %158 = arith.mulf %155, %157 : vector<8x8xf32>
    %cst_26 = arith.constant dense<0.000000e+00> : vector<8xf32>
    %159 = vector.multi_reduction <add>, %158, %cst_26 [1] : vector<8x8xf32> to vector<8xf32>
    %160 = vector.shape_cast %159 : vector<8xf32> to vector<8x1xf32>
    %161 = vector.extract_strided_slice %13 {offsets = [1, 0, 0], sizes = [1, 8, 8], strides = [1, 1, 1]} : vector<2x8x32xf32> to vector<1x8x8xf32>
    %162 = vector.shape_cast %161 : vector<1x8x8xf32> to vector<8x8xf32>
    %163 = arith.mulf %155, %162 : vector<8x8xf32>
    %cst_27 = arith.constant dense<0.000000e+00> : vector<8xf32>
    %164 = vector.multi_reduction <add>, %163, %cst_27 [1] : vector<8x8xf32> to vector<8xf32>
    %165 = vector.shape_cast %164 : vector<8xf32> to vector<8x1xf32>
    %166 = arith.maximumf %160, %165 : vector<8x1xf32>
    %167 = arith.subf %160, %166 : vector<8x1xf32>
    %168 = math.exp %167 : vector<8x1xf32>
    %169 = arith.subf %165, %166 : vector<8x1xf32>
    %170 = math.exp %169 : vector<8x1xf32>
    %171 = arith.addf %168, %170 : vector<8x1xf32>
    %172 = tpu.reciprocal %171 {approx = true} : vector<8x1xf32> -> vector<8x1xf32>
    %173 = arith.mulf %168, %172 : vector<8x1xf32>
    %174 = vector.extract_strided_slice %15 {offsets = [0, 0, 0], sizes = [1, 8, 8], strides = [1, 1, 1]} : vector<2x8x32xf32> to vector<1x8x8xf32>
    %175 = vector.shape_cast %174 : vector<1x8x8xf32> to vector<8x8xf32>
    %176 = vector.broadcast %173 : vector<8x1xf32> to vector<8x8xf32>
    %177 = arith.mulf %176, %175 : vector<8x8xf32>
    %178 = arith.mulf %170, %172 : vector<8x1xf32>
    %179 = vector.extract_strided_slice %15 {offsets = [1, 0, 0], sizes = [1, 8, 8], strides = [1, 1, 1]} : vector<2x8x32xf32> to vector<1x8x8xf32>
    %180 = vector.shape_cast %179 : vector<1x8x8xf32> to vector<8x8xf32>
    %181 = vector.broadcast %178 : vector<8x1xf32> to vector<8x8xf32>
    %182 = arith.mulf %181, %180 : vector<8x8xf32>
    %183 = arith.addf %177, %182 : vector<8x8xf32>
    %184 = vector.extract_strided_slice %11 {offsets = [1, 0, 8], sizes = [1, 8, 8], strides = [1, 1, 1]} : vector<2x8x32xf32> to vector<1x8x8xf32>
    %185 = vector.shape_cast %184 : vector<1x8x8xf32> to vector<8x8xf32>
    %186 = vector.extract_strided_slice %13 {offsets = [0, 0, 8], sizes = [1, 8, 8], strides = [1, 1, 1]} : vector<2x8x32xf32> to vector<1x8x8xf32>
    %187 = vector.shape_cast %186 : vector<1x8x8xf32> to vector<8x8xf32>
    %188 = arith.mulf %185, %187 : vector<8x8xf32>
    %cst_28 = arith.constant dense<0.000000e+00> : vector<8xf32>
    %189 = vector.multi_reduction <add>, %188, %cst_28 [1] : vector<8x8xf32> to vector<8xf32>
    %190 = vector.shape_cast %189 : vector<8xf32> to vector<8x1xf32>
    %191 = vector.extract_strided_slice %13 {offsets = [1, 0, 8], sizes = [1, 8, 8], strides = [1, 1, 1]} : vector<2x8x32xf32> to vector<1x8x8xf32>
    %192 = vector.shape_cast %191 : vector<1x8x8xf32> to vector<8x8xf32>
    %193 = arith.mulf %185, %192 : vector<8x8xf32>
    %cst_29 = arith.constant dense<0.000000e+00> : vector<8xf32>
    %194 = vector.multi_reduction <add>, %193, %cst_29 [1] : vector<8x8xf32> to vector<8xf32>
    %195 = vector.shape_cast %194 : vector<8xf32> to vector<8x1xf32>
    %196 = arith.maximumf %190, %195 : vector<8x1xf32>
    %197 = arith.subf %190, %196 : vector<8x1xf32>
    %198 = math.exp %197 : vector<8x1xf32>
    %199 = arith.subf %195, %196 : vector<8x1xf32>
    %200 = math.exp %199 : vector<8x1xf32>
    %201 = arith.addf %198, %200 : vector<8x1xf32>
    %202 = tpu.reciprocal %201 {approx = true} : vector<8x1xf32> -> vector<8x1xf32>
    %203 = arith.mulf %198, %202 : vector<8x1xf32>
    %204 = vector.extract_strided_slice %15 {offsets = [0, 0, 8], sizes = [1, 8, 8], strides = [1, 1, 1]} : vector<2x8x32xf32> to vector<1x8x8xf32>
    %205 = vector.shape_cast %204 : vector<1x8x8xf32> to vector<8x8xf32>
    %206 = vector.broadcast %203 : vector<8x1xf32> to vector<8x8xf32>
    %207 = arith.mulf %206, %205 : vector<8x8xf32>
    %208 = arith.mulf %200, %202 : vector<8x1xf32>
    %209 = vector.extract_strided_slice %15 {offsets = [1, 0, 8], sizes = [1, 8, 8], strides = [1, 1, 1]} : vector<2x8x32xf32> to vector<1x8x8xf32>
    %210 = vector.shape_cast %209 : vector<1x8x8xf32> to vector<8x8xf32>
    %211 = vector.broadcast %208 : vector<8x1xf32> to vector<8x8xf32>
    %212 = arith.mulf %211, %210 : vector<8x8xf32>
    %213 = arith.addf %207, %212 : vector<8x8xf32>
    %214 = vector.extract_strided_slice %11 {offsets = [1, 0, 16], sizes = [1, 8, 8], strides = [1, 1, 1]} : vector<2x8x32xf32> to vector<1x8x8xf32>
    %215 = vector.shape_cast %214 : vector<1x8x8xf32> to vector<8x8xf32>
    %216 = vector.extract_strided_slice %13 {offsets = [0, 0, 16], sizes = [1, 8, 8], strides = [1, 1, 1]} : vector<2x8x32xf32> to vector<1x8x8xf32>
    %217 = vector.shape_cast %216 : vector<1x8x8xf32> to vector<8x8xf32>
    %218 = arith.mulf %215, %217 : vector<8x8xf32>
    %cst_30 = arith.constant dense<0.000000e+00> : vector<8xf32>
    %219 = vector.multi_reduction <add>, %218, %cst_30 [1] : vector<8x8xf32> to vector<8xf32>
    %220 = vector.shape_cast %219 : vector<8xf32> to vector<8x1xf32>
    %221 = vector.extract_strided_slice %13 {offsets = [1, 0, 16], sizes = [1, 8, 8], strides = [1, 1, 1]} : vector<2x8x32xf32> to vector<1x8x8xf32>
    %222 = vector.shape_cast %221 : vector<1x8x8xf32> to vector<8x8xf32>
    %223 = arith.mulf %215, %222 : vector<8x8xf32>
    %cst_31 = arith.constant dense<0.000000e+00> : vector<8xf32>
    %224 = vector.multi_reduction <add>, %223, %cst_31 [1] : vector<8x8xf32> to vector<8xf32>
    %225 = vector.shape_cast %224 : vector<8xf32> to vector<8x1xf32>
    %226 = arith.maximumf %220, %225 : vector<8x1xf32>
    %227 = arith.subf %220, %226 : vector<8x1xf32>
    %228 = math.exp %227 : vector<8x1xf32>
    %229 = arith.subf %225, %226 : vector<8x1xf32>
    %230 = math.exp %229 : vector<8x1xf32>
    %231 = arith.addf %228, %230 : vector<8x1xf32>
    %232 = tpu.reciprocal %231 {approx = true} : vector<8x1xf32> -> vector<8x1xf32>
    %233 = arith.mulf %228, %232 : vector<8x1xf32>
    %234 = vector.extract_strided_slice %15 {offsets = [0, 0, 16], sizes = [1, 8, 8], strides = [1, 1, 1]} : vector<2x8x32xf32> to vector<1x8x8xf32>
    %235 = vector.shape_cast %234 : vector<1x8x8xf32> to vector<8x8xf32>
    %236 = vector.broadcast %233 : vector<8x1xf32> to vector<8x8xf32>
    %237 = arith.mulf %236, %235 : vector<8x8xf32>
    %238 = arith.mulf %230, %232 : vector<8x1xf32>
    %239 = vector.extract_strided_slice %15 {offsets = [1, 0, 16], sizes = [1, 8, 8], strides = [1, 1, 1]} : vector<2x8x32xf32> to vector<1x8x8xf32>
    %240 = vector.shape_cast %239 : vector<1x8x8xf32> to vector<8x8xf32>
    %241 = vector.broadcast %238 : vector<8x1xf32> to vector<8x8xf32>
    %242 = arith.mulf %241, %240 : vector<8x8xf32>
    %243 = arith.addf %237, %242 : vector<8x8xf32>
    %244 = vector.extract_strided_slice %11 {offsets = [1, 0, 24], sizes = [1, 8, 8], strides = [1, 1, 1]} : vector<2x8x32xf32> to vector<1x8x8xf32>
    %245 = vector.shape_cast %244 : vector<1x8x8xf32> to vector<8x8xf32>
    %246 = vector.extract_strided_slice %13 {offsets = [0, 0, 24], sizes = [1, 8, 8], strides = [1, 1, 1]} : vector<2x8x32xf32> to vector<1x8x8xf32>
    %247 = vector.shape_cast %246 : vector<1x8x8xf32> to vector<8x8xf32>
    %248 = arith.mulf %245, %247 : vector<8x8xf32>
    %cst_32 = arith.constant dense<0.000000e+00> : vector<8xf32>
    %249 = vector.multi_reduction <add>, %248, %cst_32 [1] : vector<8x8xf32> to vector<8xf32>
    %250 = vector.shape_cast %249 : vector<8xf32> to vector<8x1xf32>
    %251 = vector.extract_strided_slice %13 {offsets = [1, 0, 24], sizes = [1, 8, 8], strides = [1, 1, 1]} : vector<2x8x32xf32> to vector<1x8x8xf32>
    %252 = vector.shape_cast %251 : vector<1x8x8xf32> to vector<8x8xf32>
    %253 = arith.mulf %245, %252 : vector<8x8xf32>
    %cst_33 = arith.constant dense<0.000000e+00> : vector<8xf32>
    %254 = vector.multi_reduction <add>, %253, %cst_33 [1] : vector<8x8xf32> to vector<8xf32>
    %255 = vector.shape_cast %254 : vector<8xf32> to vector<8x1xf32>
    %256 = arith.maximumf %250, %255 : vector<8x1xf32>
    %257 = arith.subf %250, %256 : vector<8x1xf32>
    %258 = math.exp %257 : vector<8x1xf32>
    %259 = arith.subf %255, %256 : vector<8x1xf32>
    %260 = math.exp %259 : vector<8x1xf32>
    %261 = arith.addf %258, %260 : vector<8x1xf32>
    %262 = tpu.reciprocal %261 {approx = true} : vector<8x1xf32> -> vector<8x1xf32>
    %263 = arith.mulf %258, %262 : vector<8x1xf32>
    %264 = vector.extract_strided_slice %15 {offsets = [0, 0, 24], sizes = [1, 8, 8], strides = [1, 1, 1]} : vector<2x8x32xf32> to vector<1x8x8xf32>
    %265 = vector.shape_cast %264 : vector<1x8x8xf32> to vector<8x8xf32>
    %266 = vector.broadcast %263 : vector<8x1xf32> to vector<8x8xf32>
    %267 = arith.mulf %266, %265 : vector<8x8xf32>
    %268 = arith.mulf %260, %262 : vector<8x1xf32>
    %269 = vector.extract_strided_slice %15 {offsets = [1, 0, 24], sizes = [1, 8, 8], strides = [1, 1, 1]} : vector<2x8x32xf32> to vector<1x8x8xf32>
    %270 = vector.shape_cast %269 : vector<1x8x8xf32> to vector<8x8xf32>
    %271 = vector.broadcast %268 : vector<8x1xf32> to vector<8x8xf32>
    %272 = arith.mulf %271, %270 : vector<8x8xf32>
    %273 = arith.addf %267, %272 : vector<8x8xf32>
    %274 = arith.truncf %183 : vector<8x8xf32> to vector<8x8xbf16>
    %c0_34 = arith.constant 0 : index
    %c0_35 = arith.constant 0 : index
    %275 = vector.load %arg4[%c0_34, %c0_35] : memref<32x32xbf16, #tpu.memory_space<vmem>>, vector<8x32xbf16>
    %cst_36 = arith.constant dense<0.000000e+00> : vector<8x32xf32>
    %276 = tpu.matmul %274, %275, %cst_36 {dimension_numbers = #tpu.dot_dimension_numbers<[1], [0], [0], [1], [0, 0, 1, 1], [], []>} : vector<8x8xbf16>, vector<8x32xbf16>, vector<8x32xf32> -> vector<8x32xf32>
    %277 = arith.truncf %213 : vector<8x8xf32> to vector<8x8xbf16>
    %c8_37 = arith.constant 8 : index
    %c0_38 = arith.constant 0 : index
    %278 = vector.load %arg4[%c8_37, %c0_38] : memref<32x32xbf16, #tpu.memory_space<vmem>>, vector<8x32xbf16>
    %cst_39 = arith.constant dense<0.000000e+00> : vector<8x32xf32>
    %279 = tpu.matmul %277, %278, %cst_39 {dimension_numbers = #tpu.dot_dimension_numbers<[1], [0], [0], [1], [0, 0, 1, 1], [], []>} : vector<8x8xbf16>, vector<8x32xbf16>, vector<8x32xf32> -> vector<8x32xf32>
    %280 = arith.addf %276, %279 : vector<8x32xf32>
    %281 = arith.truncf %243 : vector<8x8xf32> to vector<8x8xbf16>
    %c16_40 = arith.constant 16 : index
    %c0_41 = arith.constant 0 : index
    %282 = vector.load %arg4[%c16_40, %c0_41] : memref<32x32xbf16, #tpu.memory_space<vmem>>, vector<8x32xbf16>
    %cst_42 = arith.constant dense<0.000000e+00> : vector<8x32xf32>
    %283 = tpu.matmul %281, %282, %cst_42 {dimension_numbers = #tpu.dot_dimension_numbers<[1], [0], [0], [1], [0, 0, 1, 1], [], []>} : vector<8x8xbf16>, vector<8x32xbf16>, vector<8x32xf32> -> vector<8x32xf32>
    %284 = arith.addf %280, %283 : vector<8x32xf32>
    %285 = arith.truncf %273 : vector<8x8xf32> to vector<8x8xbf16>
    %c24_43 = arith.constant 24 : index
    %c0_44 = arith.constant 0 : index
    %286 = vector.load %arg4[%c24_43, %c0_44] : memref<32x32xbf16, #tpu.memory_space<vmem>>, vector<8x32xbf16>
    %cst_45 = arith.constant dense<0.000000e+00> : vector<8x32xf32>
    %287 = tpu.matmul %285, %286, %cst_45 {dimension_numbers = #tpu.dot_dimension_numbers<[1], [0], [0], [1], [0, 0, 1, 1], [], []>} : vector<8x8xbf16>, vector<8x32xbf16>, vector<8x32xf32> -> vector<8x32xf32>
    %288 = arith.addf %284, %287 : vector<8x32xf32>
    %c0_46 = arith.constant 0 : index
    %c0_47 = arith.constant 0 : index
    %289 = vector.load %arg5[%c0_46, %c0_47] : memref<1x32xf32, #tpu.memory_space<vmem>>, vector<1x32xf32>
    %290 = vector.broadcast %289 : vector<1x32xf32> to vector<8x32xf32>
    %291 = arith.addf %288, %290 : vector<8x32xf32>
    %292 = tpu.concatenate %153, %291 in 0 : vector<8x32xf32>, vector<8x32xf32> -> vector<16x32xf32>
    %293 = arith.addf %1, %292 : vector<16x32xf32>
    %c0_48 = arith.constant 0 : index
    %c0_49 = arith.constant 0 : index
    %294 = vector.load %arg6[%c0_48, %c0_49] : memref<1x32xf32, #tpu.memory_space<vmem>>, vector<1x32xf32>
    %c0_50 = arith.constant 0 : index
    %c0_51 = arith.constant 0 : index
    %295 = vector.load %arg7[%c0_50, %c0_51] : memref<1x32xf32, #tpu.memory_space<vmem>>, vector<1x32xf32>
    %cst_52 = arith.constant dense<0.000000e+00> : vector<16xf32>
    %296 = vector.multi_reduction <add>, %293, %cst_52 [1] : vector<16x32xf32> to vector<16xf32>
    %297 = vector.shape_cast %296 : vector<16xf32> to vector<16x1xf32>
    %cst_53 = arith.constant 3.200000e+01 : f32
    %298 = vector.broadcast %cst_53 : f32 to vector<16x1xf32>
    %299 = arith.divf %297, %298 : vector<16x1xf32>
    %300 = vector.broadcast %299 : vector<16x1xf32> to vector<16x32xf32>
    %301 = arith.subf %293, %300 : vector<16x32xf32>
    %302 = arith.mulf %301, %301 : vector<16x32xf32>
    %cst_54 = arith.constant dense<0.000000e+00> : vector<16xf32>
    %303 = vector.multi_reduction <add>, %302, %cst_54 [1] : vector<16x32xf32> to vector<16xf32>
    %304 = vector.shape_cast %303 : vector<16xf32> to vector<16x1xf32>
    %cst_55 = arith.constant 3.200000e+01 : f32
    %305 = vector.broadcast %cst_55 : f32 to vector<16x1xf32>
    %306 = arith.divf %304, %305 : vector<16x1xf32>
    %307 = vector.broadcast %299 : vector<16x1xf32> to vector<16x32xf32>
    %308 = arith.subf %293, %307 : vector<16x32xf32>
    %cst_56 = arith.constant 9.99999974E-6 : f32
    %309 = vector.broadcast %cst_56 : f32 to vector<16x1xf32>
    %310 = arith.addf %306, %309 : vector<16x1xf32>
    %311 = math.rsqrt %310 : vector<16x1xf32>
    %312 = vector.broadcast %311 : vector<16x1xf32> to vector<16x32xf32>
    %313 = arith.mulf %308, %312 : vector<16x32xf32>
    %314 = vector.broadcast %294 : vector<1x32xf32> to vector<16x32xf32>
    %315 = arith.mulf %313, %314 : vector<16x32xf32>
    %316 = vector.broadcast %295 : vector<1x32xf32> to vector<16x32xf32>
    %317 = arith.addf %315, %316 : vector<16x32xf32>
    %318 = arith.truncf %317 : vector<16x32xf32> to vector<16x32xbf16>
    %c0_57 = arith.constant 0 : index
    %c0_58 = arith.constant 0 : index
    %319 = vector.load %arg10[%c0_57, %c0_58] : memref<32x128xbf16, #tpu.memory_space<vmem>>, vector<32x128xbf16>
    %cst_59 = arith.constant dense<0.000000e+00> : vector<16x128xf32>
    %320 = tpu.matmul %318, %319, %cst_59 {dimension_numbers = #tpu.dot_dimension_numbers<[1], [0], [0], [1], [0, 0, 1, 1], [], []>} : vector<16x32xbf16>, vector<32x128xbf16>, vector<16x128xf32> -> vector<16x128xf32>
    %c0_60 = arith.constant 0 : index
    %c0_61 = arith.constant 0 : index
    %321 = vector.load %arg11[%c0_60, %c0_61] : memref<1x128xf32, #tpu.memory_space<vmem>>, vector<1x128xf32>
    %322 = vector.broadcast %321 : vector<1x128xf32> to vector<16x128xf32>
    %323 = arith.addf %320, %322 : vector<16x128xf32>
    %cst_62 = arith.constant 5.000000e-01 : f32
    %324 = vector.broadcast %cst_62 : f32 to vector<16x128xf32>
    %325 = arith.mulf %324, %323 : vector<16x128xf32>
    %cst_63 = arith.constant 0.707106769 : f32
    %326 = vector.broadcast %cst_63 : f32 to vector<16x128xf32>
    %327 = arith.mulf %323, %326 : vector<16x128xf32>
    %328 = math.erf %327 : vector<16x128xf32>
    %cst_64 = arith.constant 1.000000e+00 : f32
    %329 = vector.broadcast %cst_64 : f32 to vector<16x128xf32>
    %330 = arith.addf %329, %328 : vector<16x128xf32>
    %331 = arith.mulf %325, %330 : vector<16x128xf32>
    %332 = arith.truncf %331 : vector<16x128xf32> to vector<16x128xbf16>
    %c0_65 = arith.constant 0 : index
    %c0_66 = arith.constant 0 : index
    %333 = vector.load %arg12[%c0_65, %c0_66] : memref<128x32xbf16, #tpu.memory_space<vmem>>, vector<128x32xbf16>
    %cst_67 = arith.constant dense<0.000000e+00> : vector<16x32xf32>
    %334 = tpu.matmul %332, %333, %cst_67 {dimension_numbers = #tpu.dot_dimension_numbers<[1], [0], [0], [1], [0, 0, 1, 1], [], []>} : vector<16x128xbf16>, vector<128x32xbf16>, vector<16x32xf32> -> vector<16x32xf32>
    %c0_68 = arith.constant 0 : index
    %c0_69 = arith.constant 0 : index
    %335 = vector.load %arg13[%c0_68, %c0_69] : memref<1x32xf32, #tpu.memory_space<vmem>>, vector<1x32xf32>
    %336 = vector.broadcast %335 : vector<1x32xf32> to vector<16x32xf32>
    %337 = arith.addf %334, %336 : vector<16x32xf32>
    %338 = arith.addf %317, %337 : vector<16x32xf32>
    %c0_70 = arith.constant 0 : index
    %c0_71 = arith.constant 0 : index
    %339 = vector.load %arg8[%c0_70, %c0_71] : memref<1x32xf32, #tpu.memory_space<vmem>>, vector<1x32xf32>
    %c0_72 = arith.constant 0 : index
    %c0_73 = arith.constant 0 : index
    %340 = vector.load %arg9[%c0_72, %c0_73] : memref<1x32xf32, #tpu.memory_space<vmem>>, vector<1x32xf32>
    %cst_74 = arith.constant dense<0.000000e+00> : vector<16xf32>
    %341 = vector.multi_reduction <add>, %338, %cst_74 [1] : vector<16x32xf32> to vector<16xf32>
    %342 = vector.shape_cast %341 : vector<16xf32> to vector<16x1xf32>
    %cst_75 = arith.constant 3.200000e+01 : f32
    %343 = vector.broadcast %cst_75 : f32 to vector<16x1xf32>
    %344 = arith.divf %342, %343 : vector<16x1xf32>
    %345 = vector.broadcast %344 : vector<16x1xf32> to vector<16x32xf32>
    %346 = arith.subf %338, %345 : vector<16x32xf32>
    %347 = arith.mulf %346, %346 : vector<16x32xf32>
    %cst_76 = arith.constant dense<0.000000e+00> : vector<16xf32>
    %348 = vector.multi_reduction <add>, %347, %cst_76 [1] : vector<16x32xf32> to vector<16xf32>
    %349 = vector.shape_cast %348 : vector<16xf32> to vector<16x1xf32>
    %cst_77 = arith.constant 3.200000e+01 : f32
    %350 = vector.broadcast %cst_77 : f32 to vector<16x1xf32>
    %351 = arith.divf %349, %350 : vector<16x1xf32>
    %352 = vector.broadcast %344 : vector<16x1xf32> to vector<16x32xf32>
    %353 = arith.subf %338, %352 : vector<16x32xf32>
    %cst_78 = arith.constant 9.99999974E-6 : f32
    %354 = vector.broadcast %cst_78 : f32 to vector<16x1xf32>
    %355 = arith.addf %351, %354 : vector<16x1xf32>
    %356 = math.rsqrt %355 : vector<16x1xf32>
    %357 = vector.broadcast %356 : vector<16x1xf32> to vector<16x32xf32>
    %358 = arith.mulf %353, %357 : vector<16x32xf32>
    %359 = vector.broadcast %339 : vector<1x32xf32> to vector<16x32xf32>
    %360 = arith.mulf %358, %359 : vector<16x32xf32>
    %361 = vector.broadcast %340 : vector<1x32xf32> to vector<16x32xf32>
    %362 = arith.addf %360, %361 : vector<16x32xf32>
    %363 = vector.shape_cast %362 : vector<16x32xf32> to vector<2x8x32xf32>
    %c0_79 = arith.constant 0 : index
    %c0_80 = arith.constant 0 : index
    %c0_81 = arith.constant 0 : index
    %364 = vector.load %arg14[%c0_79, %c0_80, %c0_81] : memref<2x8x32xf32, #tpu.memory_space<vmem>>, vector<2x8x32xf32>
    tpu.vector_store %arg14[%c0_79, %c0_80, %c0_81], %363 {strides = array<i32>} : memref<2x8x32xf32, #tpu.memory_space<vmem>>, vector<2x8x32xf32>,
    return
  }
  func.func @transform_0(%arg0: i32) -> (i32, i32, i32) {
    %c0_i32 = arith.constant 0 : i32
    %c0_i32_0 = arith.constant 0 : i32
    %c0_i32_1 = arith.constant 0 : i32
    return %c0_i32, %arg0, %c0_i32_0 : i32, i32, i32
  }
  func.func @transform_1(%arg0: i32) -> (i32, i32) {
    %c0_i32 = arith.constant 0 : i32
    %c0_i32_0 = arith.constant 0 : i32
    %c0_i32_1 = arith.constant 0 : i32
    return %c0_i32, %c0_i32_0 : i32, i32
  }
  func.func @transform_2(%arg0: i32) -> (i32, i32) {
    %c0_i32 = arith.constant 0 : i32
    %c0_i32_0 = arith.constant 0 : i32
    %c0_i32_1 = arith.constant 0 : i32
    return %c0_i32, %c0_i32_0 : i32, i32
  }
  func.func @transform_3(%arg0: i32) -> (i32, i32) {
    %c0_i32 = arith.constant 0 : i32
    %c0_i32_0 = arith.constant 0 : i32
    %c0_i32_1 = arith.constant 0 : i32
    return %c0_i32, %c0_i32_0 : i32, i32
  }
  func.func @transform_4(%arg0: i32) -> (i32, i32) {
    %c0_i32 = arith.constant 0 : i32
    %c0_i32_0 = arith.constant 0 : i32
    %c0_i32_1 = arith.constant 0 : i32
    return %c0_i32, %c0_i32_0 : i32, i32
  }
  func.func @transform_5(%arg0: i32) -> (i32, i32) {
    %c0_i32 = arith.constant 0 : i32
    %c0_i32_0 = arith.constant 0 : i32
    %c0_i32_1 = arith.constant 0 : i32
    return %c0_i32, %c0_i32_0 : i32, i32
  }
  func.func @transform_6(%arg0: i32) -> (i32, i32) {
    %c0_i32 = arith.constant 0 : i32
    %c0_i32_0 = arith.constant 0 : i32
    %c0_i32_1 = arith.constant 0 : i32
    return %c0_i32, %c0_i32_0 : i32, i32
  }
  func.func @transform_7(%arg0: i32) -> (i32, i32) {
    %c0_i32 = arith.constant 0 : i32
    %c0_i32_0 = arith.constant 0 : i32
    %c0_i32_1 = arith.constant 0 : i32
    return %c0_i32, %c0_i32_0 : i32, i32
  }
  func.func @transform_8(%arg0: i32) -> (i32, i32) {
    %c0_i32 = arith.constant 0 : i32
    %c0_i32_0 = arith.constant 0 : i32
    %c0_i32_1 = arith.constant 0 : i32
    return %c0_i32, %c0_i32_0 : i32, i32
  }
  func.func @transform_9(%arg0: i32) -> (i32, i32) {
    %c0_i32 = arith.constant 0 : i32
    %c0_i32_0 = arith.constant 0 : i32
    %c0_i32_1 = arith.constant 0 : i32
    return %c0_i32, %c0_i32_0 : i32, i32
  }
  func.func @transform_10(%arg0: i32) -> (i32, i32) {
    %c0_i32 = arith.constant 0 : i32
    %c0_i32_0 = arith.constant 0 : i32
    %c0_i32_1 = arith.constant 0 : i32
    return %c0_i32, %c0_i32_0 : i32, i32
  }
  func.func @transform_11(%arg0: i32) -> (i32, i32) {
    %c0_i32 = arith.constant 0 : i32
    %c0_i32_0 = arith.constant 0 : i32
    %c0_i32_1 = arith.constant 0 : i32
    return %c0_i32, %c0_i32_0 : i32, i32
  }
  func.func @transform_12(%arg0: i32) -> (i32, i32) {
    %c0_i32 = arith.constant 0 : i32
    %c0_i32_0 = arith.constant 0 : i32
    %c0_i32_1 = arith.constant 0 : i32
    return %c0_i32, %c0_i32_0 : i32, i32
  }
  func.func @transform_13(%arg0: i32) -> (i32, i32, i32) {
    %c0_i32 = arith.constant 0 : i32
    %c0_i32_0 = arith.constant 0 : i32
    %c0_i32_1 = arith.constant 0 : i32
    return %c0_i32, %arg0, %c0_i32_0 : i32, i32, i32
  }
}

</mosaic_0001>

<llo_original>
// kernel: multi_framework_processor.2
$region0: #{multi_framework_processor.2}
  #allocation0 [shape = 'u32[]', space=smem, size = 0x4, offset = 0x4, fixed_abs, tag = 'smem constant byte address 0x4 - core index']
  #allocation1 [shape = 'u32[144,128]{1,0:T(1,128)}', space=vmem, size = 0x12000, scoped, tag = 'internal scratch']
  #allocation2 [shape = 'f32[1,1]{1,0:T(1,128)S(1)}', space=vmem, size = 0x200, scoped, tag = 'scoped memory for multi_framework_processor.2']
  %s0 = inlined_call_operand.vmem [shape: bf16[16,32], index: 0, kind: input, shape index: {}]
  %s1 = inlined_call_operand.vmem [shape: bf16[32,5], index: 1, kind: input, shape index: {}]
  %s2 = inlined_call_operand.vmem [shape: f32[1,5], index: 2, kind: input, shape index: {}]
  %s3 = inlined_call_operand.vmem [shape: bf16[32,80], index: 3, kind: input, shape index: {}]
  %s4 = inlined_call_operand.vmem [shape: f32[1,80], index: 4, kind: input, shape index: {}]
  %s5 = inlined_call_operand.vmem [shape: bf16[80,32], index: 5, kind: input, shape index: {}]
  %s6 = inlined_call_operand.vmem [shape: f32[1,32], index: 6, kind: input, shape index: {}]
  %s7 = inlined_call_operand.vmem [shape: bf16[32,128], index: 7, kind: input, shape index: {}]
  %s8 = inlined_call_operand.vmem [shape: f32[1,128], index: 8, kind: input, shape index: {}]
  %s9 = inlined_call_operand.vmem [shape: f32[1,128], index: 9, kind: input, shape index: {}]
  %s10 = inlined_call_operand.<no memory space> [shape: f32[1,1], index: 10, kind: input, shape index: {}]
  %s11 = inlined_call_operand.vmem [shape: f32[16,80], index: 11, kind: output, shape index: {0}]
  %s12 = inlined_call_operand.vmem [shape: f32[16,32], index: 12, kind: output, shape index: {1}]
  %s13 = inlined_call_operand.vmem [shape: f32[16,1], index: 13, kind: output, shape index: {2}]
  %14 = xla_tuple %s11, %s12, %s13
  %s15 = sld [smem:[#allocation0]]
  $region93: #{multi_framework_processor.2} parent=0
    _
  %s17 = ssub.s32 1, %s15
  %s18 = scalar_select 0, %s17, %s15
  %v19 = vstv %s10
  %20 = vst [vmem:[#allocation2] sm:$0x1] %v19
  loop: start=0, step=1, limit=4
  $region2: #{multi_framework_processor.2} parent=0 // loop_pre_header
    _
  $region3: #{multi_framework_processor.2} parent=0 // loop_header
    %s22 = sphi 0, %s26
    %p23 = scmp.ge.s32.totalorder %s22, 4
    %s32 = sphi 0, %s34
    %s35 = sphi 0, %s32
    %s36 = sphi 0, %s35
    %s52 = sphi 0, %s36
    %s56 = sphi 0, %s56
    %s58 = sphi 0, %s56
    %s59 = sphi 0, %s58
    %s73 = sphi 0, %s59
    %s77 = sphi 0, %s77
    %s79 = sphi 0, %s77
    %s80 = sphi 0, %s79
    %s94 = sphi 0, %s80
    %s98 = sphi 0, %s98
    %s100 = sphi 0, %s98
    %s101 = sphi 0, %s100
    %s115 = sphi 0, %s101
    %s119 = sphi 0, %s119
    %s121 = sphi 0, %s119
    %s122 = sphi 0, %s121
    %s136 = sphi 0, %s122
    %s140 = sphi 0, %s140
    %s142 = sphi 0, %s140
    %s143 = sphi 0, %s142
    %s157 = sphi 0, %s143
    %s161 = sphi 0, %s161
    %s163 = sphi 0, %s161
    %s164 = sphi 0, %s163
    %s178 = sphi 0, %s164
    %s182 = sphi 0, %s182
    %s184 = sphi 0, %s182
    %s185 = sphi 0, %s184
    %s199 = sphi 0, %s185
    %s203 = sphi 0, %s203
    %s205 = sphi 0, %s203
    %s206 = sphi 0, %s205
    %s220 = sphi 0, %s206
    %s224 = sphi 0, %s224
    %s226 = sphi 0, %s224
    %s227 = sphi 0, %s226
    %s241 = sphi 0, %s227
    %s245 = sphi 0, %s245
    %s247 = sphi 0, %s245
    %s248 = sphi 0, %s247
    %s262 = sphi 0, %s248
    %s268 = sphi 0, %s270
    %s271 = sphi 0, %s268
    %s272 = sphi 0, %s271
    %s288 = sphi 0, %s272
    %s294 = sphi 0, %s296
    %s297 = sphi 0, %s294
    %s298 = sphi 0, %s297
    %s314 = sphi 0, %s298
    %s320 = sphi 0, %s322
    %s323 = sphi 0, %s320
    %s324 = sphi 0, %s323
    %s340 = sphi 0, %s324
  $region4: #{multi_framework_processor.2} parent=0 // loop_header_branch
    %25 = sbr.rel (%p23) target = $region8
  $region5: #{multi_framework_processor.2} parent=0 // loop_body
    %s27 = ssub.s32 %s22, 1
    %s28 = ssub.s32 %s22, 2
    %s29 = sadd.s32 %s22, 1
    %s30 = ssub.s32 %s22, %s29
    %p31 = scmp.eq.s32.totalorder %s30, 0
    %s33 = sadd.s32 %s32, 1
    %s34 = scalar_select %p31, %s32, %s33
    %p37 = pneg %p31
    %p38 = scmp.eq.s32.totalorder %s22, 1
    %p39 = por %p37, %p38
    %p40 = scmp.ne.s32.totalorder %s32, %s35
    %p41 = scmp.eq.s32.totalorder %s22, 0
    %p42 = por %p40, %p41
    %p43 = scmp.ne.s32.totalorder %s32, %s35
    %p44 = scmp.eq.s32.totalorder %s27, 1
    %p45 = por %p43, %p44
    %p46 = scmp.ne.s32.totalorder %s35, %s36
    %p47 = scmp.eq.s32.totalorder %s27, 0
    %p48 = por %p46, %p47
    %p49 = scmp.ne.s32.totalorder %s35, %s36
    %p50 = scmp.eq.s32.totalorder %s28, 1
    %p51 = por %p49, %p50
    %p53 = scmp.ne.s32.totalorder %s36, %s52
    %p54 = scmp.eq.s32.totalorder %s28, 0
    %p55 = por %p53, %p54
    %s57 = sadd.s32 %s56, 1
    %p60 = scmp.eq.s32.totalorder %s22, 1
    %p61 = scmp.ne.s32.totalorder %s56, %s58
    %p62 = scmp.eq.s32.totalorder %s22, 0
    %p63 = por %p61, %p62
    %p64 = scmp.ne.s32.totalorder %s56, %s58
    %p65 = scmp.eq.s32.totalorder %s27, 1
    %p66 = por %p64, %p65
    %p67 = scmp.ne.s32.totalorder %s58, %s59
    %p68 = scmp.eq.s32.totalorder %s27, 0
    %p69 = por %p67, %p68
    %p70 = scmp.ne.s32.totalorder %s58, %s59
    %p71 = scmp.eq.s32.totalorder %s28, 1
    %p72 = por %p70, %p71
    %p74 = scmp.ne.s32.totalorder %s59, %s73
    %p75 = scmp.eq.s32.totalorder %s28, 0
    %p76 = por %p74, %p75
    %s78 = sadd.s32 %s77, 1
    %p81 = scmp.eq.s32.totalorder %s22, 1
    %p82 = scmp.ne.s32.totalorder %s77, %s79
    %p83 = scmp.eq.s32.totalorder %s22, 0
    %p84 = por %p82, %p83
    %p85 = scmp.ne.s32.totalorder %s77, %s79
    %p86 = scmp.eq.s32.totalorder %s27, 1
    %p87 = por %p85, %p86
    %p88 = scmp.ne.s32.totalorder %s79, %s80
    %p89 = scmp.eq.s32.totalorder %s27, 0
    %p90 = por %p88, %p89
    %p91 = scmp.ne.s32.totalorder %s79, %s80
    %p92 = scmp.eq.s32.totalorder %s28, 1
    %p93 = por %p91, %p92
    %p95 = scmp.ne.s32.totalorder %s80, %s94
    %p96 = scmp.eq.s32.totalorder %s28, 0
    %p97 = por %p95, %p96
    %s99 = sadd.s32 %s98, 1
    %p102 = scmp.eq.s32.totalorder %s22, 1
    %p103 = scmp.ne.s32.totalorder %s98, %s100
    %p104 = scmp.eq.s32.totalorder %s22, 0
    %p105 = por %p103, %p104
    %p106 = scmp.ne.s32.totalorder %s98, %s100
    %p107 = scmp.eq.s32.totalorder %s27, 1
    %p108 = por %p106, %p107
    %p109 = scmp.ne.s32.totalorder %s100, %s101
    %p110 = scmp.eq.s32.totalorder %s27, 0
    %p111 = por %p109, %p110
    %p112 = scmp.ne.s32.totalorder %s100, %s101
    %p113 = scmp.eq.s32.totalorder %s28, 1
    %p114 = por %p112, %p113
    %p116 = scmp.ne.s32.totalorder %s101, %s115
    %p117 = scmp.eq.s32.totalorder %s28, 0
    %p118 = por %p116, %p117
    %s120 = sadd.s32 %s119, 1
    %p123 = scmp.eq.s32.totalorder %s22, 1
    %p124 = scmp.ne.s32.totalorder %s119, %s121
    %p125 = scmp.eq.s32.totalorder %s22, 0
    %p126 = por %p124, %p125
    %p127 = scmp.ne.s32.totalorder %s119, %s121
    %p128 = scmp.eq.s32.totalorder %s27, 1
    %p129 = por %p127, %p128
    %p130 = scmp.ne.s32.totalorder %s121, %s122
    %p131 = scmp.eq.s32.totalorder %s27, 0
    %p132 = por %p130, %p131
    %p133 = scmp.ne.s32.totalorder %s121, %s122
    %p134 = scmp.eq.s32.totalorder %s28, 1
    %p135 = por %p133, %p134
    %p137 = scmp.ne.s32.totalorder %s122, %s136
    %p138 = scmp.eq.s32.totalorder %s28, 0
    %p139 = por %p137, %p138
    %s141 = sadd.s32 %s140, 1
    %p144 = scmp.eq.s32.totalorder %s22, 1
    %p145 = scmp.ne.s32.totalorder %s140, %s142
    %p146 = scmp.eq.s32.totalorder %s22, 0
    %p147 = por %p145, %p146
    %p148 = scmp.ne.s32.totalorder %s140, %s142
    %p149 = scmp.eq.s32.totalorder %s27, 1
    %p150 = por %p148, %p149
    %p151 = scmp.ne.s32.totalorder %s142, %s143
    %p152 = scmp.eq.s32.totalorder %s27, 0
    %p153 = por %p151, %p152
    %p154 = scmp.ne.s32.totalorder %s142, %s143
    %p155 = scmp.eq.s32.totalorder %s28, 1
    %p156 = por %p154, %p155
    %p158 = scmp.ne.s32.totalorder %s143, %s157
    %p159 = scmp.eq.s32.totalorder %s28, 0
    %p160 = por %p158, %p159
    %s162 = sadd.s32 %s161, 1
    %p165 = scmp.eq.s32.totalorder %s22, 1
    %p166 = scmp.ne.s32.totalorder %s161, %s163
    %p167 = scmp.eq.s32.totalorder %s22, 0
    %p168 = por %p166, %p167
    %p169 = scmp.ne.s32.totalorder %s161, %s163
    %p170 = scmp.eq.s32.totalorder %s27, 1
    %p171 = por %p169, %p170
    %p172 = scmp.ne.s32.totalorder %s163, %s164
    %p173 = scmp.eq.s32.totalorder %s27, 0
    %p174 = por %p172, %p173
    %p175 = scmp.ne.s32.totalorder %s163, %s164
    %p176 = scmp.eq.s32.totalorder %s28, 1
    %p177 = por %p175, %p176
    %p179 = scmp.ne.s32.totalorder %s164, %s178
    %p180 = scmp.eq.s32.totalorder %s28, 0
    %p181 = por %p179, %p180
    %s183 = sadd.s32 %s182, 1
    %p186 = scmp.eq.s32.totalorder %s22, 1
    %p187 = scmp.ne.s32.totalorder %s182, %s184
    %p188 = scmp.eq.s32.totalorder %s22, 0
    %p189 = por %p187, %p188
    %p190 = scmp.ne.s32.totalorder %s182, %s184
    %p191 = scmp.eq.s32.totalorder %s27, 1
    %p192 = por %p190, %p191
    %p193 = scmp.ne.s32.totalorder %s184, %s185
    %p194 = scmp.eq.s32.totalorder %s27, 0
    %p195 = por %p193, %p194
    %p196 = scmp.ne.s32.totalorder %s184, %s185
    %p197 = scmp.eq.s32.totalorder %s28, 1
    %p198 = por %p196, %p197
    %p200 = scmp.ne.s32.totalorder %s185, %s199
    %p201 = scmp.eq.s32.totalorder %s28, 0
    %p202 = por %p200, %p201
    %s204 = sadd.s32 %s203, 1
    %p207 = scmp.eq.s32.totalorder %s22, 1
    %p208 = scmp.ne.s32.totalorder %s203, %s205
    %p209 = scmp.eq.s32.totalorder %s22, 0
    %p210 = por %p208, %p209
    %p211 = scmp.ne.s32.totalorder %s203, %s205
    %p212 = scmp.eq.s32.totalorder %s27, 1
    %p213 = por %p211, %p212
    %p214 = scmp.ne.s32.totalorder %s205, %s206
    %p215 = scmp.eq.s32.totalorder %s27, 0
    %p216 = por %p214, %p215
    %p217 = scmp.ne.s32.totalorder %s205, %s206
    %p218 = scmp.eq.s32.totalorder %s28, 1
    %p219 = por %p217, %p218
    %p221 = scmp.ne.s32.totalorder %s206, %s220
    %p222 = scmp.eq.s32.totalorder %s28, 0
    %p223 = por %p221, %p222
    %s225 = sadd.s32 %s224, 1
    %p228 = scmp.eq.s32.totalorder %s22, 1
    %p229 = scmp.ne.s32.totalorder %s224, %s226
    %p230 = scmp.eq.s32.totalorder %s22, 0
    %p231 = por %p229, %p230
    %p232 = scmp.ne.s32.totalorder %s224, %s226
    %p233 = scmp.eq.s32.totalorder %s27, 1
    %p234 = por %p232, %p233
    %p235 = scmp.ne.s32.totalorder %s226, %s227
    %p236 = scmp.eq.s32.totalorder %s27, 0
    %p237 = por %p235, %p236
    %p238 = scmp.ne.s32.totalorder %s226, %s227
    %p239 = scmp.eq.s32.totalorder %s28, 1
    %p240 = por %p238, %p239
    %p242 = scmp.ne.s32.totalorder %s227, %s241
    %p243 = scmp.eq.s32.totalorder %s28, 0
    %p244 = por %p242, %p243
    %s246 = sadd.s32 %s245, 1
    %p249 = scmp.eq.s32.totalorder %s22, 1
    %p250 = scmp.ne.s32.totalorder %s245, %s247
    %p251 = scmp.eq.s32.totalorder %s22, 0
    %p252 = por %p250, %p251
    %p253 = scmp.ne.s32.totalorder %s245, %s247
    %p254 = scmp.eq.s32.totalorder %s27, 1
    %p255 = por %p253, %p254
    %p256 = scmp.ne.s32.totalorder %s247, %s248
    %p257 = scmp.eq.s32.totalorder %s27, 0
    %p258 = por %p256, %p257
    %p259 = scmp.ne.s32.totalorder %s247, %s248
    %p260 = scmp.eq.s32.totalorder %s28, 1
    %p261 = por %p259, %p260
    %p263 = scmp.ne.s32.totalorder %s248, %s262
    %p264 = scmp.eq.s32.totalorder %s28, 0
    %p265 = por %p263, %p264
    %s266 = ssub.s32 %s22, %s29
    %p267 = scmp.eq.s32.totalorder %s266, 0
    %s269 = sadd.s32 %s268, 1
    %s270 = scalar_select %p267, %s268, %s269
    %p273 = pneg %p267
    %p274 = scmp.eq.s32.totalorder %s22, 1
    %p275 = por %p273, %p274
    %p276 = scmp.ne.s32.totalorder %s268, %s271
    %p277 = scmp.eq.s32.totalorder %s22, 0
    %p278 = por %p276, %p277
    %p279 = scmp.ne.s32.totalorder %s268, %s271
    %p280 = scmp.eq.s32.totalorder %s27, 1
    %p281 = por %p279, %p280
    %p282 = scmp.ne.s32.totalorder %s271, %s272
    %p283 = scmp.eq.s32.totalorder %s27, 0
    %p284 = por %p282, %p283
    %p285 = scmp.ne.s32.totalorder %s271, %s272
    %p286 = scmp.eq.s32.totalorder %s28, 1
    %p287 = por %p285, %p286
    %p289 = scmp.ne.s32.totalorder %s272, %s288
    %p290 = scmp.eq.s32.totalorder %s28, 0
    %p291 = por %p289, %p290
    %s292 = ssub.s32 %s22, %s29
    %p293 = scmp.eq.s32.totalorder %s292, 0
    %s295 = sadd.s32 %s294, 1
    %s296 = scalar_select %p293, %s294, %s295
    %p299 = pneg %p293
    %p300 = scmp.eq.s32.totalorder %s22, 1
    %p301 = por %p299, %p300
    %p302 = scmp.ne.s32.totalorder %s294, %s297
    %p303 = scmp.eq.s32.totalorder %s22, 0
    %p304 = por %p302, %p303
    %p305 = scmp.ne.s32.totalorder %s294, %s297
    %p306 = scmp.eq.s32.totalorder %s27, 1
    %p307 = por %p305, %p306
    %p308 = scmp.ne.s32.totalorder %s297, %s298
    %p309 = scmp.eq.s32.totalorder %s27, 0
    %p310 = por %p308, %p309
    %p311 = scmp.ne.s32.totalorder %s297, %s298
    %p312 = scmp.eq.s32.totalorder %s28, 1
    %p313 = por %p311, %p312
    %p315 = scmp.ne.s32.totalorder %s298, %s314
    %p316 = scmp.eq.s32.totalorder %s28, 0
    %p317 = por %p315, %p316
    %s318 = ssub.s32 %s22, %s29
    %p319 = scmp.eq.s32.totalorder %s318, 0
    %s321 = sadd.s32 %s320, 1
    %s322 = scalar_select %p319, %s320, %s321
    %p325 = pneg %p319
    %p326 = scmp.eq.s32.totalorder %s22, 1
    %p327 = por %p325, %p326
    %p328 = scmp.ne.s32.totalorder %s320, %s323
    %p329 = scmp.eq.s32.totalorder %s22, 0
    %p330 = por %p328, %p329
    %p331 = scmp.ne.s32.totalorder %s320, %s323
    %p332 = scmp.eq.s32.totalorder %s27, 1
    %p333 = por %p331, %p332
    %p334 = scmp.ne.s32.totalorder %s323, %s324
    %p335 = scmp.eq.s32.totalorder %s27, 0
    %p336 = por %p334, %p335
    %p337 = scmp.ne.s32.totalorder %s323, %s324
    %p338 = scmp.eq.s32.totalorder %s28, 1
    %p339 = por %p337, %p338
    %p341 = scmp.ne.s32.totalorder %s324, %s340
    %p342 = scmp.eq.s32.totalorder %s28, 0
    %p343 = por %p341, %p342
    %p344 = scmp.le.s32.totalorder 1, %s22
    %p345 = scmp.lt.s32.totalorder %s22, 3
    %p346 = pnand %p344, %p345
    %p347 = pneg %p346
    // Predicated region
    $region9: #{multi_framework_processor.2} parent=5 // pred_check
      _
    $region10: #{multi_framework_processor.2} parent=5 // pred_check_branch
      %349 = sbr.rel (%p346) target = $region12
    $region11: #{multi_framework_processor.2} parent=5 // pred_region
      %s350 = ssub.s32 %s22, 1
      // Predicated region
      $region13: #{multi_framework_processor.2} parent=11 // pred_check
        %p351 = pneg %p69
      $region14: #{multi_framework_processor.2} parent=11 // pred_check_branch
        %353 = sbr.rel (%p351) target = $region16
      $region15: #{multi_framework_processor.2} parent=11 // pred_region
        _
      $region16: #{multi_framework_processor.2} parent=11 // pred_fallthru
        _
      // Predicated region
      $region17: #{multi_framework_processor.2} parent=11 // pred_check
        %p354 = pneg %p90
      $region18: #{multi_framework_processor.2} parent=11 // pred_check_branch
        %356 = sbr.rel (%p354) target = $region20
      $region19: #{multi_framework_processor.2} parent=11 // pred_region
        _
      $region20: #{multi_framework_processor.2} parent=11 // pred_fallthru
        _
      // Predicated region
      $region21: #{multi_framework_processor.2} parent=11 // pred_check
        %p357 = pneg %p111
      $region22: #{multi_framework_processor.2} parent=11 // pred_check_branch
        %359 = sbr.rel (%p357) target = $region24
      $region23: #{multi_framework_processor.2} parent=11 // pred_region
        _
      $region24: #{multi_framework_processor.2} parent=11 // pred_fallthru
        _
      // Predicated region
      $region25: #{multi_framework_processor.2} parent=11 // pred_check
        %p360 = pneg %p132
      $region26: #{multi_framework_processor.2} parent=11 // pred_check_branch
        %362 = sbr.rel (%p360) target = $region28
      $region27: #{multi_framework_processor.2} parent=11 // pred_region
        _
      $region28: #{multi_framework_processor.2} parent=11 // pred_fallthru
        _
      // Predicated region
      $region29: #{multi_framework_processor.2} parent=11 // pred_check
        %p363 = pneg %p153
      $region30: #{multi_framework_processor.2} parent=11 // pred_check_branch
        %365 = sbr.rel (%p363) target = $region32
      $region31: #{multi_framework_processor.2} parent=11 // pred_region
        _
      $region32: #{multi_framework_processor.2} parent=11 // pred_fallthru
        _
      // Predicated region
      $region33: #{multi_framework_processor.2} parent=11 // pred_check
        %p366 = pneg %p174
      $region34: #{multi_framework_processor.2} parent=11 // pred_check_branch
        %368 = sbr.rel (%p366) target = $region36
      $region35: #{multi_framework_processor.2} parent=11 // pred_region
        _
      $region36: #{multi_framework_processor.2} parent=11 // pred_fallthru
        _
      // Predicated region
      $region37: #{multi_framework_processor.2} parent=11 // pred_check
        %p369 = pneg %p195
      $region38: #{multi_framework_processor.2} parent=11 // pred_check_branch
        %371 = sbr.rel (%p369) target = $region40
      $region39: #{multi_framework_processor.2} parent=11 // pred_region
        _
      $region40: #{multi_framework_processor.2} parent=11 // pred_fallthru
        _
      // Predicated region
      $region41: #{multi_framework_processor.2} parent=11 // pred_check
        %p372 = pneg %p216
      $region42: #{multi_framework_processor.2} parent=11 // pred_check_branch
        %374 = sbr.rel (%p372) target = $region44
      $region43: #{multi_framework_processor.2} parent=11 // pred_region
        _
      $region44: #{multi_framework_processor.2} parent=11 // pred_fallthru
        _
      // Predicated region
      $region45: #{multi_framework_processor.2} parent=11 // pred_check
        %p375 = pneg %p237
      $region46: #{multi_framework_processor.2} parent=11 // pred_check_branch
        %377 = sbr.rel (%p375) target = $region48
      $region47: #{multi_framework_processor.2} parent=11 // pred_region
        _
      $region48: #{multi_framework_processor.2} parent=11 // pred_fallthru
        _
      // Predicated region
      $region49: #{multi_framework_processor.2} parent=11 // pred_check
        %p378 = pneg %p258
      $region50: #{multi_framework_processor.2} parent=11 // pred_check_branch
        %380 = sbr.rel (%p378) target = $region52
      $region51: #{multi_framework_processor.2} parent=11 // pred_region
        _
      $region52: #{multi_framework_processor.2} parent=11 // pred_fallthru
        _
    $region12: #{multi_framework_processor.2} parent=5 // pred_fallthru
      _
    %p381 = scmp.lt.s32.totalorder %s22, 2
    // Predicated region
    $region53: #{multi_framework_processor.2} parent=5 // pred_check
      %p382 = pneg %p381
    $region54: #{multi_framework_processor.2} parent=5 // pred_check_branch
      %384 = sbr.rel (%p382) target = $region56
    $region55: #{multi_framework_processor.2} parent=5 // pred_region
      // Predicated region
      $region57: #{multi_framework_processor.2} parent=55 // pred_check
        %p385 = pneg %p42
      $region58: #{multi_framework_processor.2} parent=55 // pred_check_branch
        %387 = sbr.rel (%p385) target = $region60
      $region59: #{multi_framework_processor.2} parent=55 // pred_region
        %p388 = scmp.lt.s32.totalorder %s22, 1
        %s389 = scalar_select %p388, %s22, 1
        %s390 = smul.addr %s389, 4
        %s391 = scalar_lea.vmem %s0, %s390
      $region60: #{multi_framework_processor.2} parent=55 // pred_fallthru
        _
    $region56: #{multi_framework_processor.2} parent=5 // pred_fallthru
      _
    %p392 = scmp.le.s32.totalorder 1, %s22
    %p393 = scmp.lt.s32.totalorder %s22, 3
    %p394 = pnand %p392, %p393
    %p395 = pneg %p394
    // Predicated region
    $region61: #{multi_framework_processor.2} parent=5 // pred_check
      _
    $region62: #{multi_framework_processor.2} parent=5 // pred_check_branch
      %397 = sbr.rel (%p394) target = $region64
    $region63: #{multi_framework_processor.2} parent=5 // pred_region
      %s398 = ssub.s32 %s22, 1
      %p399 = scmp.lt.s32.totalorder %s27, 1
      %s400 = scalar_select %p399, %s27, 1
      %s401 = smul.addr %s400, 4
      %s402 = scalar_lea.vmem %s0, %s401
      %p403 = pneg %p48
      %p404 = pneg %p45
      %p405 = pneg %p69
      %p406 = pneg %p66
      %p407 = pneg %p90
      %p408 = pneg %p87
      %p409 = pneg %p111
      %p410 = pneg %p108
      %p411 = pneg %p132
      %p412 = pneg %p129
      %p413 = pneg %p153
      %p414 = pneg %p150
      %p415 = pneg %p174
      %p416 = pneg %p171
      %p417 = pneg %p195
      %p418 = pneg %p192
      %p419 = pneg %p216
      %p420 = pneg %p213
      %p421 = pneg %p237
      %p422 = pneg %p234
      %p423 = pneg %p258
      %p424 = pneg %p255
      %p425 = pneg %p284
      %p426 = pneg %p281
      %p427 = scmp.lt.s32.totalorder %s27, 1
      %s428 = scalar_select %p427, %s27, 1
      %s429 = smul.addr %s428, 8
      %s430 = scalar_lea.vmem %s11, %s429
      %p431 = pneg %p310
      %p432 = pneg %p307
      %p433 = scmp.lt.s32.totalorder %s27, 1
      %s434 = scalar_select %p433, %s27, 1
      %s435 = smul.addr %s434, 8
      %s436 = scalar_lea.vmem %s12, %s435
      %p437 = pneg %p336
      %p438 = pneg %p333
      %p439 = scmp.lt.s32.totalorder %s27, 1
      %s440 = scalar_select %p439, %s27, 1
      %s441 = smul.addr %s440, 8
      %s442 = scalar_lea.vmem %s13, %s441
      %p443 = scmp.lt.s32.totalorder %s27, 1
      %s444 = scalar_select %p443, %s27, 1
      %s445 = smul.addr %s444, 4
      %s446 = scalar_lea.vmem %s0, %s445
      %p447 = scmp.lt.s32.totalorder %s27, 1
      %s448 = scalar_select %p447, %s27, 1
      %s449 = smul.addr %s448, 8
      %s450 = scalar_lea.vmem %s11, %s449
      %p451 = scmp.lt.s32.totalorder %s27, 1
      %s452 = scalar_select %p451, %s27, 1
      %s453 = smul.addr %s452, 8
      %s454 = scalar_lea.vmem %s12, %s453
      %p455 = scmp.lt.s32.totalorder %s27, 1
      %s456 = scalar_select %p455, %s27, 1
      %s457 = smul.addr %s456, 8
      %s458 = scalar_lea.vmem %s13, %s457
      %v460 = vld [vmem:[%s446] sm:$0xf]
      %v461 = vld [vmem:[%s1] sm:$0xf]
      %v462 = vld [vmem:[%s1 + $0x4] sm:$0xf]
      %v463 = vld [vmem:[%s1 + $0x8] sm:$0xf]
      %v464 = vld [vmem:[%s1 + $0xc] sm:$0xf]
      %v465 = vld [vmem:[%s2] sm:$0x1]
      %v467 = vlaneseq
      %v468 = vshrl.u32 %v467, 7
      %v469 = vsub.s32 0, %v468
      %v470 = vrot.slane %v465, %v469
      %v476 = vunpack.c.l.b16 %v461
      %v477 = vunpack.c.l.b16 %v462
      %v478 = vunpack.c.l.b16 %v463
      %v479 = vunpack.c.l.b16 %v464
      %v480 = vpack.c.b16 %v477, %v476
      %v481 = vpack.c.b16 %v479, %v478
      %vm484 = vcmask 261120
      %v486 = vsel %vm484, %v460, 0
      %488 = vmatprep.subr.bf16.mxu0 0
      %489 = vmatpush1.bf16.msra.mxu0 %v480
      %490 = vmatprep.subr.bf16.mxu0 0
      %491 = vmatpush1.bf16.msra.mxu0 %v481
      %492 = vmatprep.subr.bf16.mxu0 0
      %493 = vmatpush1.bf16.msra.mxu0 0
      %494 = vmatprep.subr.bf16.mxu0 0
      %495 = vmatpush1.bf16.msra.mxu0 0
      %496 = vmatprep.subr.bf16.mxu0 0
      %497 = vmatpush1.bf16.msra.mxu0 0
      %498 = vmatprep.subr.bf16.mxu0 0
      %499 = vmatpush1.bf16.msra.mxu0 0
      %500 = vmatprep.subr.bf16.mxu0 0
      %501 = vmatpush1.bf16.msra.mxu0 0
      %502 = vmatprep.subr.bf16.mxu0 0
      %503 = vmatpush1.bf16.msra.mxu0 0
      %504 = vmatprep.subr.bf16.mxu0 0
      %505 = vmatpush1.bf16.msra.mxu0 0
      %506 = vmatprep.subr.bf16.mxu0 0
      %507 = vmatpush1.bf16.msra.mxu0 0
      %508 = vmatprep.subr.bf16.mxu0 0
      %509 = vmatpush1.bf16.msra.mxu0 0
      %510 = vmatprep.subr.bf16.mxu0 0
      %511 = vmatpush1.bf16.msra.mxu0 0
      %512 = vmatprep.subr.bf16.mxu0 0
      %513 = vmatpush1.bf16.msra.mxu0 0
      %514 = vmatprep.subr.bf16.mxu0 0
      %515 = vmatpush1.bf16.msra.mxu0 0
      %516 = vmatprep.subr.bf16.mxu0 0
      %517 = vmatpush1.bf16.msra.mxu0 0
      %518 = vmatprep.subr.bf16.mxu0 0
      %519 = vmatpush1.bf16.msra.mxu0 0
      %520 = vmatprep.mubr.bf16.mxu0 0
      %521 = vmatmul.mubr.bf16.gmra.mrb[0].mxu0 %v486
      %v522 = vpop.f32.mrb[0].mxu0
      %v523 = vadd.f32 %v470, %v522
      %v524 = vpop.f32.mrb[0].mxu0
      %v525 = vpop.f32.mrb[0].mxu0
      %v526 = vpop.f32.mrb[0].mxu0
      %527 = vdwg.mxu0
      %vm528 = vcmask 39936
      %v529 = vsel %vm528, %v523, -inf
      %530 = vmax.xlane.f32.xlu0 %v529
      %v531 = vpop.xlane.xlu0 %530
      %v532 = vsub.f32 %v523, %v531
      %v533 = vmul.f32 %v532, 1.442695
      %v534 = vpow.pop %v533
      %v535 = vsel %vm528, %v534, 0.0
      %536 = vadd.xlane.f32.xlu0 %v535
      %v537 = vpop.xlane.xlu0 %536
      %v538 = vrcp.pop %v537
      %v539 = vmul.f32 %v534, %v538
      %v540 = vld [vmem:[%s3] sm:$0xf]
      %v541 = vld [vmem:[%s3 + $0x4] sm:$0xf]
      %v542 = vld [vmem:[%s3 + $0x8] sm:$0xf]
      %v543 = vld [vmem:[%s3 + $0xc] sm:$0xf]
      %v544 = vld [vmem:[%s4] sm:$0x1]
      %v546 = vlaneseq
      %v547 = vshrl.u32 %v546, 7
      %v548 = vsub.s32 0, %v547
      %v549 = vrot.slane %v544, %v548
      %v555 = vunpack.c.l.b16 %v540
      %v556 = vunpack.c.l.b16 %v541
      %v557 = vunpack.c.l.b16 %v542
      %v558 = vunpack.c.l.b16 %v543
      %v559 = vpack.c.b16 %v556, %v555
      %v560 = vpack.c.b16 %v558, %v557
      %563 = vmatprep.subr.bf16.mxu0 0
      %564 = vmatpush1.bf16.msra.mxu0 %v559
      %565 = vmatprep.subr.bf16.mxu0 0
      %566 = vmatpush1.bf16.msra.mxu0 %v560
      %567 = vmatprep.subr.bf16.mxu0 0
      %568 = vmatpush1.bf16.msra.mxu0 0
      %569 = vmatprep.subr.bf16.mxu0 0
      %570 = vmatpush1.bf16.msra.mxu0 0
      %571 = vmatprep.subr.bf16.mxu0 0
      %572 = vmatpush1.bf16.msra.mxu0 0
      %573 = vmatprep.subr.bf16.mxu0 0
      %574 = vmatpush1.bf16.msra.mxu0 0
      %575 = vmatprep.subr.bf16.mxu0 0
      %576 = vmatpush1.bf16.msra.mxu0 0
      %577 = vmatprep.subr.bf16.mxu0 0
      %578 = vmatpush1.bf16.msra.mxu0 0
      %579 = vmatprep.subr.bf16.mxu0 0
      %580 = vmatpush1.bf16.msra.mxu0 0
      %581 = vmatprep.subr.bf16.mxu0 0
      %582 = vmatpush1.bf16.msra.mxu0 0
      %583 = vmatprep.subr.bf16.mxu0 0
      %584 = vmatpush1.bf16.msra.mxu0 0
      %585 = vmatprep.subr.bf16.mxu0 0
      %586 = vmatpush1.bf16.msra.mxu0 0
      %587 = vmatprep.subr.bf16.mxu0 0
      %588 = vmatpush1.bf16.msra.mxu0 0
      %589 = vmatprep.subr.bf16.mxu0 0
      %590 = vmatpush1.bf16.msra.mxu0 0
      %591 = vmatprep.subr.bf16.mxu0 0
      %592 = vmatpush1.bf16.msra.mxu0 0
      %593 = vmatprep.subr.bf16.mxu0 0
      %594 = vmatpush1.bf16.msra.mxu0 0
      %595 = vmatprep.mubr.bf16.mxu0 0
      %596 = vmatmul.mubr.bf16.gmra.mrb[0].mxu0 %v486
      %v597 = vpop.f32.mrb[0].mxu0
      %v598 = vadd.f32 %v549, %v597
      %v599 = vpop.f32.mrb[0].mxu0
      %v600 = vpop.f32.mrb[0].mxu0
      %v601 = vpop.f32.mrb[0].mxu0
      %602 = vdwg.mxu0
      %vm603 = vcmask 654336
      %604 = vst.msk [vmem:[%s450] sm:$0xff] %vm603, %v598
      %v605 = vlaneseq
      %v606 = vand.u32 %v605, 127
      %vm607 = vcmp.lt.s32.totalorder %v606, 16
      %vm608 = vcmp.lt.s32.totalorder %v606, 32
      %vm609 = vcmp.lt.s32.totalorder %v606, 48
      %vm610 = vcmp.lt.s32.totalorder %v606, 64
      %612 = vset.pattern.permute.xlu0 3
      %613 = vperm.xlu0 %612, %v539
      %v614 = vpop.permute.xlu0 %613
      %616 = vset.pattern.permute.xlu0 4
      %617 = vperm.xlu0 %616, %v539
      %v618 = vpop.permute.xlu0 %617
      %v620 = vsel %vm610, %v614, %v618
      %621 = vset.pattern.permute.xlu0 2
      %622 = vperm.xlu0 %621, %v539
      %v623 = vpop.permute.xlu0 %622
      %v625 = vsel %vm609, %v623, %v620
      %626 = vset.pattern.permute.xlu0 1
      %627 = vperm.xlu0 %626, %v539
      %v628 = vpop.permute.xlu0 %627
      %v630 = vsel %vm608, %v628, %v625
      %631 = vset.pattern.permute.xlu0 0
      %632 = vperm.xlu0 %631, %v539
      %v633 = vpop.permute.xlu0 %632
      %v635 = vsel %vm607, %v633, %v630
      %v636 = vmul.f32 %v598, %v635
      %v637 = vpack.c.bf16 %v636, %v636
      %v638 = vld [vmem:[%s5] sm:$0xf]
      %v639 = vld [vmem:[%s5 + $0x4] sm:$0xf]
      %v640 = vld [vmem:[%s5 + $0x8] sm:$0xf]
      %v641 = vld [vmem:[%s5 + $0xc] sm:$0xf]
      %v642 = vld [vmem:[%s5 + $0x10] sm:$0xf]
      %v643 = vld [vmem:[%s5 + $0x14] sm:$0xf]
      %v644 = vld [vmem:[%s5 + $0x18] sm:$0xf]
      %v645 = vld [vmem:[%s5 + $0x1c] sm:$0xf]
      %v646 = vld [vmem:[%s5 + $0x20] sm:$0xf]
      %v647 = vld [vmem:[%s5 + $0x24] sm:$0xf]
      %v648 = vld [vmem:[%s6] sm:$0x1]
      %v650 = vlaneseq
      %v651 = vshrl.u32 %v650, 7
      %v652 = vsub.s32 0, %v651
      %v653 = vrot.slane %v648, %v652
      %v665 = vunpack.c.l.b16 %v638
      %v666 = vunpack.c.l.b16 %v639
      %v667 = vunpack.c.l.b16 %v640
      %v668 = vunpack.c.l.b16 %v641
      %v669 = vunpack.c.l.b16 %v642
      %v670 = vunpack.c.l.b16 %v643
      %v671 = vunpack.c.l.b16 %v644
      %v672 = vunpack.c.l.b16 %v645
      %v673 = vunpack.c.l.b16 %v646
      %v674 = vunpack.c.l.b16 %v647
      %v675 = vpack.c.b16 %v666, %v665
      %v676 = vpack.c.b16 %v668, %v667
      %v677 = vpack.c.b16 %v670, %v669
      %v678 = vpack.c.b16 %v672, %v671
      %v679 = vpack.c.b16 %v674, %v673
      %v686 = vsel %vm603, %v637, 0
      %688 = vmatprep.subr.bf16.mxu0 0
      %689 = vmatpush1.bf16.msra.mxu0 %v675
      %690 = vmatprep.subr.bf16.mxu0 0
      %691 = vmatpush1.bf16.msra.mxu0 %v676
      %692 = vmatprep.subr.bf16.mxu0 0
      %693 = vmatpush1.bf16.msra.mxu0 %v677
      %694 = vmatprep.subr.bf16.mxu0 0
      %695 = vmatpush1.bf16.msra.mxu0 %v678
      %696 = vmatprep.subr.bf16.mxu0 0
      %697 = vmatpush1.bf16.msra.mxu0 %v679
      %698 = vmatprep.subr.bf16.mxu0 0
      %699 = vmatpush1.bf16.msra.mxu0 0
      %700 = vmatprep.subr.bf16.mxu0 0
      %701 = vmatpush1.bf16.msra.mxu0 0
      %702 = vmatprep.subr.bf16.mxu0 0
      %703 = vmatpush1.bf16.msra.mxu0 0
      %704 = vmatprep.subr.bf16.mxu0 0
      %705 = vmatpush1.bf16.msra.mxu0 0
      %706 = vmatprep.subr.bf16.mxu0 0
      %707 = vmatpush1.bf16.msra.mxu0 0
      %708 = vmatprep.subr.bf16.mxu0 0
      %709 = vmatpush1.bf16.msra.mxu0 0
      %710 = vmatprep.subr.bf16.mxu0 0
      %711 = vmatpush1.bf16.msra.mxu0 0
      %712 = vmatprep.subr.bf16.mxu0 0
      %713 = vmatpush1.bf16.msra.mxu0 0
      %714 = vmatprep.subr.bf16.mxu0 0
      %715 = vmatpush1.bf16.msra.mxu0 0
      %716 = vmatprep.subr.bf16.mxu0 0
      %717 = vmatpush1.bf16.msra.mxu0 0
      %718 = vmatprep.subr.bf16.mxu0 0
      %719 = vmatpush1.bf16.msra.mxu0 0
      %720 = vmatprep.mubr.bf16.mxu0 0
      %721 = vmatmul.mubr.bf16.gmra.mrb[0].mxu0 %v686
      %v722 = vpop.f32.mrb[0].mxu0
      %v723 = vadd.f32 %v653, %v722
      %v724 = vpop.f32.mrb[0].mxu0
      %v725 = vpop.f32.mrb[0].mxu0
      %v726 = vpop.f32.mrb[0].mxu0
      %727 = vdwg.mxu0
      %728 = vst.msk [vmem:[%s454] sm:$0xff] %vm484, %v723
      %v729 = vpack.c.bf16 %v723, %v723
      %v730 = vld [vmem:[%s7] sm:$0xf]
      %v731 = vld [vmem:[%s7 + $0x4] sm:$0xf]
      %v732 = vld [vmem:[%s7 + $0x8] sm:$0xf]
      %v733 = vld [vmem:[%s7 + $0xc] sm:$0xf]
      %v734 = vld [vmem:[%s8] sm:$0x1]
      %v736 = vlaneseq
      %v737 = vshrl.u32 %v736, 7
      %v738 = vsub.s32 0, %v737
      %v739 = vrot.slane %v734, %v738
      %v745 = vunpack.c.l.b16 %v730
      %v746 = vunpack.c.l.b16 %v731
      %v747 = vunpack.c.l.b16 %v732
      %v748 = vunpack.c.l.b16 %v733
      %v749 = vpack.c.b16 %v746, %v745
      %v750 = vpack.c.b16 %v748, %v747
      %v754 = vsel %vm484, %v729, 0
      %756 = vmatprep.subr.bf16.mxu0 0
      %757 = vmatpush1.bf16.msra.mxu0 %v749
      %758 = vmatprep.subr.bf16.mxu0 0
      %759 = vmatpush1.bf16.msra.mxu0 %v750
      %760 = vmatprep.subr.bf16.mxu0 0
      %761 = vmatpush1.bf16.msra.mxu0 0
      %762 = vmatprep.subr.bf16.mxu0 0
      %763 = vmatpush1.bf16.msra.mxu0 0
      %764 = vmatprep.subr.bf16.mxu0 0
      %765 = vmatpush1.bf16.msra.mxu0 0
      %766 = vmatprep.subr.bf16.mxu0 0
      %767 = vmatpush1.bf16.msra.mxu0 0
      %768 = vmatprep.subr.bf16.mxu0 0
      %769 = vmatpush1.bf16.msra.mxu0 0
      %770 = vmatprep.subr.bf16.mxu0 0
      %771 = vmatpush1.bf16.msra.mxu0 0
      %772 = vmatprep.subr.bf16.mxu0 0
      %773 = vmatpush1.bf16.msra.mxu0 0
      %774 = vmatprep.subr.bf16.mxu0 0
      %775 = vmatpush1.bf16.msra.mxu0 0
      %776 = vmatprep.subr.bf16.mxu0 0
      %777 = vmatpush1.bf16.msra.mxu0 0
      %778 = vmatprep.subr.bf16.mxu0 0
      %779 = vmatpush1.bf16.msra.mxu0 0
      %780 = vmatprep.subr.bf16.mxu0 0
      %781 = vmatpush1.bf16.msra.mxu0 0
      %782 = vmatprep.subr.bf16.mxu0 0
      %783 = vmatpush1.bf16.msra.mxu0 0
      %784 = vmatprep.subr.bf16.mxu0 0
      %785 = vmatpush1.bf16.msra.mxu0 0
      %786 = vmatprep.subr.bf16.mxu0 0
      %787 = vmatpush1.bf16.msra.mxu0 0
      %788 = vmatprep.mubr.bf16.mxu0 0
      %789 = vmatmul.mubr.bf16.gmra.mrb[0].mxu0 %v754
      %v790 = vpop.f32.mrb[0].mxu0
      %v791 = vadd.f32 %v739, %v790
      %v792 = vpop.f32.mrb[0].mxu0
      %v793 = vpop.f32.mrb[0].mxu0
      %v794 = vpop.f32.mrb[0].mxu0
      %795 = vdwg.mxu0
      %v796 = vmul.f32 %v791, 0.5
      %v797 = vmul.f32 %v791, 0.70710677
      %v798 = verf.f32.pop %v797
      %v799 = vadd.f32 %v798, 1.0
      %v800 = vmul.f32 %v796, %v799
      %v801 = vld [vmem:[%s9] sm:$0x1]
      %v803 = vlaneseq
      %v804 = vshrl.u32 %v803, 7
      %v805 = vsub.s32 0, %v804
      %v806 = vrot.slane %v801, %v805
      %v808 = vmul.f32 %v800, %v806
      %809 = vadd.xlane.f32.xlu0 %v808
      %v810 = vpop.xlane.xlu0 %809
      %v811 = vld [vmem:[#allocation2] sm:$0x1]
      %v813 = vlaneseq
      %v814 = vshrl.u32 %v813, 7
      %v815 = vsub.s32 0, %v814
      %v816 = vrot.slane %v811, %v815
      %v818 = vadd.f32 %v810, %v816
      %v819 = vxor.u32 %v818, 2147483648
      %v820 = vmul.f32 %v819, 1.442695
      %v821 = vpow.pop %v820
      %v822 = vadd.f32 %v821, 1.0
      %v823 = vrcp.pop %v822
      %v824 = vmul.f32 1.0, %v823
      %vm825 = vcmask 7168
      %826 = vst.msk [vmem:[%s458] sm:$0xff] %vm825, %v824
      %p827 = scmp.lt.s32.totalorder %s27, 1
      %s828 = scalar_select %p827, %s27, 1
      %s829 = smul.addr %s828, 8
      %s830 = scalar_lea.vmem %s11, %s829
      %p831 = scmp.lt.s32.totalorder %s27, 1
      %s832 = scalar_select %p831, %s27, 1
      %s833 = smul.addr %s832, 8
      %s834 = scalar_lea.vmem %s12, %s833
      %p835 = scmp.lt.s32.totalorder %s27, 1
      %s836 = scalar_select %p835, %s27, 1
      %s837 = smul.addr %s836, 8
      %s838 = scalar_lea.vmem %s13, %s837
      // Predicated region
      $region65: #{multi_framework_processor.2} parent=63 // pred_check
        %p839 = pneg %p281
      $region66: #{multi_framework_processor.2} parent=63 // pred_check_branch
        %841 = sbr.rel (%p839) target = $region68
      $region67: #{multi_framework_processor.2} parent=63 // pred_region
        _
      $region68: #{multi_framework_processor.2} parent=63 // pred_fallthru
        _
      // Predicated region
      $region69: #{multi_framework_processor.2} parent=63 // pred_check
        %p842 = pneg %p307
      $region70: #{multi_framework_processor.2} parent=63 // pred_check_branch
        %844 = sbr.rel (%p842) target = $region72
      $region71: #{multi_framework_processor.2} parent=63 // pred_region
        _
      $region72: #{multi_framework_processor.2} parent=63 // pred_fallthru
        _
      // Predicated region
      $region73: #{multi_framework_processor.2} parent=63 // pred_check
        %p845 = pneg %p333
      $region74: #{multi_framework_processor.2} parent=63 // pred_check_branch
        %847 = sbr.rel (%p845) target = $region76
      $region75: #{multi_framework_processor.2} parent=63 // pred_region
        _
      $region76: #{multi_framework_processor.2} parent=63 // pred_fallthru
        _
    $region64: #{multi_framework_processor.2} parent=5 // pred_fallthru
      _
    %p848 = scmp.le.s32.totalorder 2, %s22
    // Predicated region
    $region77: #{multi_framework_processor.2} parent=5 // pred_check
      %p849 = pneg %p848
    $region78: #{multi_framework_processor.2} parent=5 // pred_check_branch
      %851 = sbr.rel (%p849) target = $region80
    $region79: #{multi_framework_processor.2} parent=5 // pred_region
      %s852 = ssub.s32 %s22, 2
      // Predicated region
      $region81: #{multi_framework_processor.2} parent=79 // pred_check
        %p853 = pneg %p287
      $region82: #{multi_framework_processor.2} parent=79 // pred_check_branch
        %855 = sbr.rel (%p853) target = $region84
      $region83: #{multi_framework_processor.2} parent=79 // pred_region
        %p856 = scmp.lt.s32.totalorder %s28, 1
        %s857 = scalar_select %p856, %s28, 1
        %s858 = smul.addr %s857, 8
        %s859 = scalar_lea.vmem %s11, %s858
      $region84: #{multi_framework_processor.2} parent=79 // pred_fallthru
        _
      // Predicated region
      $region85: #{multi_framework_processor.2} parent=79 // pred_check
        %p860 = pneg %p313
      $region86: #{multi_framework_processor.2} parent=79 // pred_check_branch
        %862 = sbr.rel (%p860) target = $region88
      $region87: #{multi_framework_processor.2} parent=79 // pred_region
        %p863 = scmp.lt.s32.totalorder %s28, 1
        %s864 = scalar_select %p863, %s28, 1
        %s865 = smul.addr %s864, 8
        %s866 = scalar_lea.vmem %s12, %s865
      $region88: #{multi_framework_processor.2} parent=79 // pred_fallthru
        _
      // Predicated region
      $region89: #{multi_framework_processor.2} parent=79 // pred_check
        %p867 = pneg %p339
      $region90: #{multi_framework_processor.2} parent=79 // pred_check_branch
        %869 = sbr.rel (%p867) target = $region92
      $region91: #{multi_framework_processor.2} parent=79 // pred_region
        %p870 = scmp.lt.s32.totalorder %s28, 1
        %s871 = scalar_select %p870, %s28, 1
        %s872 = smul.addr %s871, 8
        %s873 = scalar_lea.vmem %s13, %s872
      $region92: #{multi_framework_processor.2} parent=79 // pred_fallthru
        _
    $region80: #{multi_framework_processor.2} parent=5 // pred_fallthru
      _
  $region6: #{multi_framework_processor.2} parent=0 // loop_footer
    %s26 = sadd.s32 1, %s22
  $region7: #{multi_framework_processor.2} parent=0 // loop_footer_branch
    %21 = sbr.rel target = $region3
  $region8: #{multi_framework_processor.2} parent=0 // loop_exit
    _

// kernel: multi_framework_processor.3
$region0: #{multi_framework_processor.3}
  #allocation0 [shape = 'u32[]', space=smem, size = 0x4, offset = 0x4, fixed_abs, tag = 'smem constant byte address 0x4 - core index']
  #allocation1 [shape = 'u32[144,128]{1,0:T(1,128)}', space=vmem, size = 0x12000, scoped, tag = 'internal scratch']
  %s0 = inlined_call_operand.vmem [shape: f32[2,8,32], index: 0, kind: input, shape index: {}]
  %s1 = inlined_call_operand.vmem [shape: bf16[32,96], index: 1, kind: input, shape index: {}]
  %s2 = inlined_call_operand.vmem [shape: f32[1,96], index: 2, kind: input, shape index: {}]
  %s3 = inlined_call_operand.vmem [shape: bf16[32,32], index: 3, kind: input, shape index: {}]
  %s4 = inlined_call_operand.vmem [shape: f32[1,32], index: 4, kind: input, shape index: {}]
  %s5 = inlined_call_operand.vmem [shape: f32[1,32], index: 5, kind: input, shape index: {}]
  %s6 = inlined_call_operand.vmem [shape: f32[1,32], index: 6, kind: input, shape index: {}]
  %s7 = inlined_call_operand.vmem [shape: f32[1,32], index: 7, kind: input, shape index: {}]
  %s8 = inlined_call_operand.vmem [shape: f32[1,32], index: 8, kind: input, shape index: {}]
  %s9 = inlined_call_operand.vmem [shape: bf16[32,128], index: 9, kind: input, shape index: {}]
  %s10 = inlined_call_operand.vmem [shape: f32[1,128], index: 10, kind: input, shape index: {}]
  %s11 = inlined_call_operand.vmem [shape: bf16[128,32], index: 11, kind: input, shape index: {}]
  %s12 = inlined_call_operand.vmem [shape: f32[1,32], index: 12, kind: input, shape index: {}]
  %s13 = inlined_call_operand.hbm [shape: f32[2,8,32], index: 13, kind: output, shape index: {}]
  %s14 = sld [smem:[#allocation0]]
  $region62: #{multi_framework_processor.3} parent=0
    _
  %s16 = ssub.s32 1, %s14
  %s17 = scalar_select 0, %s16, %s14
  $region1: #{multi_framework_processor.3} parent=0
    #allocation2 [shape = 'u8[8192]{0}', space=vmem, size = 0x2000, scoped, tag = 'output window, operand 0, single buffered']
    #allocation3 [shape = 's32[1]{0}', space=sflag, size = 0x4, scoped, tag = 'scoped memory for multi_framework_processor.3']
    %18 = vsyncpa [#allocation3], 0
    // Predicated region
    $region2: #{multi_framework_processor.3} parent=1 // pred_check
      _
    $region3: #{multi_framework_processor.3} parent=1 // pred_check_branch
      %20 = sbr.rel (0) target = $region5
    $region4: #{multi_framework_processor.3} parent=1 // pred_region
      _
    $region5: #{multi_framework_processor.3} parent=1 // pred_fallthru
      _
    // Predicated region
    $region6: #{multi_framework_processor.3} parent=1 // pred_check
      _
    $region7: #{multi_framework_processor.3} parent=1 // pred_check_branch
      %22 = sbr.rel (0) target = $region9
    $region8: #{multi_framework_processor.3} parent=1 // pred_region
      _
    $region9: #{multi_framework_processor.3} parent=1 // pred_fallthru
      _
    // Predicated region
    $region10: #{multi_framework_processor.3} parent=1 // pred_check
      _
    $region11: #{multi_framework_processor.3} parent=1 // pred_check_branch
      %24 = sbr.rel (0) target = $region13
    $region12: #{multi_framework_processor.3} parent=1 // pred_region
      _
    $region13: #{multi_framework_processor.3} parent=1 // pred_fallthru
      _
    // Predicated region
    $region14: #{multi_framework_processor.3} parent=1 // pred_check
      _
    $region15: #{multi_framework_processor.3} parent=1 // pred_check_branch
      %26 = sbr.rel (0) target = $region17
    $region16: #{multi_framework_processor.3} parent=1 // pred_region
      _
    $region17: #{multi_framework_processor.3} parent=1 // pred_fallthru
      _
    // Predicated region
    $region18: #{multi_framework_processor.3} parent=1 // pred_check
      _
    $region19: #{multi_framework_processor.3} parent=1 // pred_check_branch
      %28 = sbr.rel (0) target = $region21
    $region20: #{multi_framework_processor.3} parent=1 // pred_region
      _
    $region21: #{multi_framework_processor.3} parent=1 // pred_fallthru
      _
    // Predicated region
    $region22: #{multi_framework_processor.3} parent=1 // pred_check
      _
    $region23: #{multi_framework_processor.3} parent=1 // pred_check_branch
      %30 = sbr.rel (0) target = $region25
    $region24: #{multi_framework_processor.3} parent=1 // pred_region
      _
    $region25: #{multi_framework_processor.3} parent=1 // pred_fallthru
      _
    // Predicated region
    $region26: #{multi_framework_processor.3} parent=1 // pred_check
      _
    $region27: #{multi_framework_processor.3} parent=1 // pred_check_branch
      %32 = sbr.rel (0) target = $region29
    $region28: #{multi_framework_processor.3} parent=1 // pred_region
      _
    $region29: #{multi_framework_processor.3} parent=1 // pred_fallthru
      _
    // Predicated region
    $region30: #{multi_framework_processor.3} parent=1 // pred_check
      _
    $region31: #{multi_framework_processor.3} parent=1 // pred_check_branch
      %34 = sbr.rel (0) target = $region33
    $region32: #{multi_framework_processor.3} parent=1 // pred_region
      _
    $region33: #{multi_framework_processor.3} parent=1 // pred_fallthru
      _
    // Predicated region
    $region34: #{multi_framework_processor.3} parent=1 // pred_check
      _
    $region35: #{multi_framework_processor.3} parent=1 // pred_check_branch
      %36 = sbr.rel (0) target = $region37
    $region36: #{multi_framework_processor.3} parent=1 // pred_region
      _
    $region37: #{multi_framework_processor.3} parent=1 // pred_fallthru
      _
    // Predicated region
    $region38: #{multi_framework_processor.3} parent=1 // pred_check
      _
    $region39: #{multi_framework_processor.3} parent=1 // pred_check_branch
      %38 = sbr.rel (0) target = $region41
    $region40: #{multi_framework_processor.3} parent=1 // pred_region
      _
    $region41: #{multi_framework_processor.3} parent=1 // pred_fallthru
      _
    // Predicated region
    $region42: #{multi_framework_processor.3} parent=1 // pred_check
      _
    $region43: #{multi_framework_processor.3} parent=1 // pred_check_branch
      %40 = sbr.rel (0) target = $region45
    $region44: #{multi_framework_processor.3} parent=1 // pred_region
      _
    $region45: #{multi_framework_processor.3} parent=1 // pred_fallthru
      _
    // Predicated region
    $region46: #{multi_framework_processor.3} parent=1 // pred_check
      _
    $region47: #{multi_framework_processor.3} parent=1 // pred_check_branch
      %42 = sbr.rel (0) target = $region49
    $region48: #{multi_framework_processor.3} parent=1 // pred_region
      _
    $region49: #{multi_framework_processor.3} parent=1 // pred_fallthru
      _
    // Predicated region
    $region50: #{multi_framework_processor.3} parent=1 // pred_check
      _
    $region51: #{multi_framework_processor.3} parent=1 // pred_check_branch
      %44 = sbr.rel (0) target = $region53
    $region52: #{multi_framework_processor.3} parent=1 // pred_region
      _
    $region53: #{multi_framework_processor.3} parent=1 // pred_fallthru
      _
    %v46 = vld [vmem:[%s0] sm:$0xff]
    %v47 = vld [vmem:[%s0 + $0x8] sm:$0xff]
    %v48 = vpack.c.bf16 %v47, %v46
    %v49 = vld [vmem:[%s1] sm:$0xf]
    %v50 = vld [vmem:[%s1 + $0x4] sm:$0xf]
    %v51 = vld [vmem:[%s1 + $0x8] sm:$0xf]
    %v52 = vld [vmem:[%s1 + $0xc] sm:$0xf]
    %v53 = vld [vmem:[%s2] sm:$0x1]
    %v55 = vlaneseq
    %v56 = vshrl.u32 %v55, 7
    %v57 = vsub.s32 0, %v56
    %v58 = vrot.slane %v53, %v57
    %v64 = vunpack.c.l.b16 %v49
    %v65 = vunpack.c.l.b16 %v50
    %v66 = vunpack.c.l.b16 %v51
    %v67 = vunpack.c.l.b16 %v52
    %v68 = vpack.c.b16 %v65, %v64
    %v69 = vpack.c.b16 %v67, %v66
    %vm72 = vcmask 261120
    %v74 = vsel %vm72, %v48, 0
    %76 = vmatprep.subr.bf16.mxu0 0
    %77 = vmatpush1.bf16.msra.mxu0 %v68
    %78 = vmatprep.subr.bf16.mxu0 0
    %79 = vmatpush1.bf16.msra.mxu0 %v69
    %80 = vmatprep.subr.bf16.mxu0 0
    %81 = vmatpush1.bf16.msra.mxu0 0
    %82 = vmatprep.subr.bf16.mxu0 0
    %83 = vmatpush1.bf16.msra.mxu0 0
    %84 = vmatprep.subr.bf16.mxu0 0
    %85 = vmatpush1.bf16.msra.mxu0 0
    %86 = vmatprep.subr.bf16.mxu0 0
    %87 = vmatpush1.bf16.msra.mxu0 0
    %88 = vmatprep.subr.bf16.mxu0 0
    %89 = vmatpush1.bf16.msra.mxu0 0
    %90 = vmatprep.subr.bf16.mxu0 0
    %91 = vmatpush1.bf16.msra.mxu0 0
    %92 = vmatprep.subr.bf16.mxu0 0
    %93 = vmatpush1.bf16.msra.mxu0 0
    %94 = vmatprep.subr.bf16.mxu0 0
    %95 = vmatpush1.bf16.msra.mxu0 0
    %96 = vmatprep.subr.bf16.mxu0 0
    %97 = vmatpush1.bf16.msra.mxu0 0
    %98 = vmatprep.subr.bf16.mxu0 0
    %99 = vmatpush1.bf16.msra.mxu0 0
    %100 = vmatprep.subr.bf16.mxu0 0
    %101 = vmatpush1.bf16.msra.mxu0 0
    %102 = vmatprep.subr.bf16.mxu0 0
    %103 = vmatpush1.bf16.msra.mxu0 0
    %104 = vmatprep.subr.bf16.mxu0 0
    %105 = vmatpush1.bf16.msra.mxu0 0
    %106 = vmatprep.subr.bf16.mxu0 0
    %107 = vmatpush1.bf16.msra.mxu0 0
    %108 = vmatprep.mubr.bf16.mxu0 0
    %109 = vmatmul.mubr.bf16.gmra.mrb[0].mxu0 %v74
    %v110 = vpop.f32.mrb[0].mxu0
    %v111 = vadd.f32 %v58, %v110
    %v112 = vpop.f32.mrb[0].mxu0
    %v113 = vpop.f32.mrb[0].mxu0
    %v114 = vadd.f32 %v58, %v113
    %v115 = vpop.f32.mrb[0].mxu0
    %116 = vdwg.mxu0
    %v117 = vmul.f32 %v111, 0.35355338
    %v118 = vmul.f32 %v114, 0.35355338
    %120 = vrot.lane.b32.xlu0 %v111, 96
    %v121 = vpop.permute.xlu0 %120
    %v123 = vmul.f32 %v117, %v121
    %vm124 = vcmask 64512
    %v125 = vsel %vm124, %v123, 0.0
    %126 = vadd.xlane.f32.xlu0 %v125
    %v127 = vpop.xlane.xlu0 %126
    %129 = vrot.lane.b32.xlu0 %v114, 96
    %v130 = vpop.permute.xlu0 %129
    %v132 = vmul.f32 %v117, %v130
    %v133 = vsel %vm124, %v132, 0.0
    %134 = vadd.xlane.f32.xlu0 %v133
    %v135 = vpop.xlane.xlu0 %134
    %v136 = vmax.f32 %v127, %v135
    %v137 = vsub.f32 %v127, %v136
    %v138 = vmul.f32 %v137, 1.442695
    %v139 = vpow.pop %v138
    %v140 = vsub.f32 %v135, %v136
    %v141 = vmul.f32 %v140, 1.442695
    %v142 = vpow.pop %v141
    %v143 = vadd.f32 %v139, %v142
    %v144 = vrcp.pop %v143
    %v145 = vmul.f32 %v139, %v144
    %v146 = vmul.f32 %v145, %v111
    %v147 = vmul.f32 %v142, %v144
    %v148 = vmul.f32 %v147, %v114
    %v149 = vadd.f32 %v146, %v148
    %151 = vrot.lane.b32.xlu0 %v123, 120
    %v152 = vpop.permute.xlu0 %151
    %v154 = vsel %vm124, %v152, 0.0
    %155 = vadd.xlane.f32.xlu0 %v154
    %v156 = vpop.xlane.xlu0 %155
    %158 = vrot.lane.b32.xlu0 %v132, 120
    %v159 = vpop.permute.xlu0 %158
    %v161 = vsel %vm124, %v159, 0.0
    %162 = vadd.xlane.f32.xlu0 %v161
    %v163 = vpop.xlane.xlu0 %162
    %v164 = vmax.f32 %v156, %v163
    %v165 = vsub.f32 %v156, %v164
    %v166 = vmul.f32 %v165, 1.442695
    %v167 = vpow.pop %v166
    %v168 = vsub.f32 %v163, %v164
    %v169 = vmul.f32 %v168, 1.442695
    %v170 = vpow.pop %v169
    %v171 = vadd.f32 %v167, %v170
    %v172 = vrcp.pop %v171
    %v173 = vmul.f32 %v167, %v172
    %v174 = vmul.f32 %v173, %v111
    %v175 = vmul.f32 %v170, %v172
    %v176 = vmul.f32 %v175, %v114
    %v177 = vadd.f32 %v174, %v176
    %178 = vrot.lane.b32.xlu0 %v123, 112
    %v179 = vpop.permute.xlu0 %178
    %v181 = vsel %vm124, %v179, 0.0
    %182 = vadd.xlane.f32.xlu0 %v181
    %v183 = vpop.xlane.xlu0 %182
    %184 = vrot.lane.b32.xlu0 %v132, 112
    %v185 = vpop.permute.xlu0 %184
    %v187 = vsel %vm124, %v185, 0.0
    %188 = vadd.xlane.f32.xlu0 %v187
    %v189 = vpop.xlane.xlu0 %188
    %v190 = vmax.f32 %v183, %v189
    %v191 = vsub.f32 %v183, %v190
    %v192 = vmul.f32 %v191, 1.442695
    %v193 = vpow.pop %v192
    %v194 = vsub.f32 %v189, %v190
    %v195 = vmul.f32 %v194, 1.442695
    %v196 = vpow.pop %v195
    %v197 = vadd.f32 %v193, %v196
    %v198 = vrcp.pop %v197
    %v199 = vmul.f32 %v193, %v198
    %v200 = vmul.f32 %v199, %v111
    %v201 = vmul.f32 %v196, %v198
    %v202 = vmul.f32 %v201, %v114
    %v203 = vadd.f32 %v200, %v202
    %204 = vrot.lane.b32.xlu0 %v123, 104
    %v205 = vpop.permute.xlu0 %204
    %v207 = vsel %vm124, %v205, 0.0
    %208 = vadd.xlane.f32.xlu0 %v207
    %v209 = vpop.xlane.xlu0 %208
    %210 = vrot.lane.b32.xlu0 %v132, 104
    %v211 = vpop.permute.xlu0 %210
    %v213 = vsel %vm124, %v211, 0.0
    %214 = vadd.xlane.f32.xlu0 %v213
    %v215 = vpop.xlane.xlu0 %214
    %v216 = vmax.f32 %v209, %v215
    %v217 = vsub.f32 %v209, %v216
    %v218 = vmul.f32 %v217, 1.442695
    %v219 = vpow.pop %v218
    %v220 = vsub.f32 %v215, %v216
    %v221 = vmul.f32 %v220, 1.442695
    %v222 = vpow.pop %v221
    %v223 = vadd.f32 %v219, %v222
    %v224 = vrcp.pop %v223
    %v225 = vmul.f32 %v219, %v224
    %v226 = vmul.f32 %v225, %v111
    %v227 = vmul.f32 %v222, %v224
    %v228 = vmul.f32 %v227, %v114
    %v229 = vadd.f32 %v226, %v228
    %v230 = vpack.c.bf16 %v149, %v149
    %v231 = vld [vmem:[%s3] sm:$0xf]
    %v232 = vpack.c.bf16 %v177, %v177
    %v233 = vld [vmem:[%s3 + $0x4] sm:$0xf]
    %235 = vrot.lane.b32.xlu0 %v232, 56
    %v236 = vpop.permute.xlu0 %235
    %v238 = vsel %vm124, %v236, 0
    %vm240 = vcmask 1043456
    %v242 = vsel %vm240, %v233, 0
    %244 = vmatprep.subr.bf16.mxu0 0
    %245 = vmatpush1.bf16.msra.mxu0 %v242
    %246 = vmatprep.subr.bf16.mxu0 0
    %247 = vmatpush1.bf16.msra.mxu0 0
    %248 = vmatprep.subr.bf16.mxu0 0
    %249 = vmatpush1.bf16.msra.mxu0 0
    %250 = vmatprep.subr.bf16.mxu0 0
    %251 = vmatpush1.bf16.msra.mxu0 0
    %252 = vmatprep.subr.bf16.mxu0 0
    %253 = vmatpush1.bf16.msra.mxu0 0
    %254 = vmatprep.subr.bf16.mxu0 0
    %255 = vmatpush1.bf16.msra.mxu0 0
    %256 = vmatprep.subr.bf16.mxu0 0
    %257 = vmatpush1.bf16.msra.mxu0 0
    %258 = vmatprep.subr.bf16.mxu0 0
    %259 = vmatpush1.bf16.msra.mxu0 0
    %260 = vmatprep.subr.bf16.mxu0 0
    %261 = vmatpush1.bf16.msra.mxu0 0
    %262 = vmatprep.subr.bf16.mxu0 0
    %263 = vmatpush1.bf16.msra.mxu0 0
    %264 = vmatprep.subr.bf16.mxu0 0
    %265 = vmatpush1.bf16.msra.mxu0 0
    %266 = vmatprep.subr.bf16.mxu0 0
    %267 = vmatpush1.bf16.msra.mxu0 0
    %268 = vmatprep.subr.bf16.mxu0 0
    %269 = vmatpush1.bf16.msra.mxu0 0
    %270 = vmatprep.subr.bf16.mxu0 0
    %271 = vmatpush1.bf16.msra.mxu0 0
    %272 = vmatprep.subr.bf16.mxu0 0
    %273 = vmatpush1.bf16.msra.mxu0 0
    %274 = vmatprep.subr.bf16.mxu0 0
    %275 = vmatpush1.bf16.msra.mxu0 0
    %276 = vmatprep.mubr.bf16.mxu0 0
    %277 = vmatmul.mubr.bf16.gmra.mrb[0].mxu0 %v238
    %v278 = vpop.f32.mrb[0].mxu0
    %v279 = vadd.f32 0.0, %v278
    %v280 = vpop.f32.mrb[0].mxu0
    %v281 = vpop.f32.mrb[0].mxu0
    %v282 = vpop.f32.mrb[0].mxu0
    %283 = vdwg.mxu0
    %285 = vrot.lane.b32.xlu0 %v230, 64
    %v286 = vpop.permute.xlu0 %285
    %v288 = vsel %vm124, %v286, 0
    %v291 = vsel %vm240, %v231, 0
    %293 = vmatprep.subr.bf16.mxu0 0
    %294 = vmatpush1.bf16.msra.mxu0 %v291
    %295 = vmatprep.subr.bf16.mxu0 0
    %296 = vmatpush1.bf16.msra.mxu0 0
    %297 = vmatprep.subr.bf16.mxu0 0
    %298 = vmatpush1.bf16.msra.mxu0 0
    %299 = vmatprep.subr.bf16.mxu0 0
    %300 = vmatpush1.bf16.msra.mxu0 0
    %301 = vmatprep.subr.bf16.mxu0 0
    %302 = vmatpush1.bf16.msra.mxu0 0
    %303 = vmatprep.subr.bf16.mxu0 0
    %304 = vmatpush1.bf16.msra.mxu0 0
    %305 = vmatprep.subr.bf16.mxu0 0
    %306 = vmatpush1.bf16.msra.mxu0 0
    %307 = vmatprep.subr.bf16.mxu0 0
    %308 = vmatpush1.bf16.msra.mxu0 0
    %309 = vmatprep.subr.bf16.mxu0 0
    %310 = vmatpush1.bf16.msra.mxu0 0
    %311 = vmatprep.subr.bf16.mxu0 0
    %312 = vmatpush1.bf16.msra.mxu0 0
    %313 = vmatprep.subr.bf16.mxu0 0
    %314 = vmatpush1.bf16.msra.mxu0 0
    %315 = vmatprep.subr.bf16.mxu0 0
    %316 = vmatpush1.bf16.msra.mxu0 0
    %317 = vmatprep.subr.bf16.mxu0 0
    %318 = vmatpush1.bf16.msra.mxu0 0
    %319 = vmatprep.subr.bf16.mxu0 0
    %320 = vmatpush1.bf16.msra.mxu0 0
    %321 = vmatprep.subr.bf16.mxu0 0
    %322 = vmatpush1.bf16.msra.mxu0 0
    %323 = vmatprep.subr.bf16.mxu0 0
    %324 = vmatpush1.bf16.msra.mxu0 0
    %325 = vmatprep.mubr.bf16.mxu0 0
    %326 = vmatmul.mubr.bf16.gmra.mrb[0].mxu0 %v288
    %v327 = vpop.f32.mrb[0].mxu0
    %v328 = vadd.f32 %v279, %v327
    %v329 = vpop.f32.mrb[0].mxu0
    %v330 = vpop.f32.mrb[0].mxu0
    %v331 = vpop.f32.mrb[0].mxu0
    %332 = vdwg.mxu0
    %v333 = vpack.c.bf16 %v203, %v203
    %v334 = vld [vmem:[%s3 + $0x8] sm:$0xf]
    %336 = vrot.lane.b32.xlu0 %v333, 48
    %v337 = vpop.permute.xlu0 %336
    %v339 = vsel %vm124, %v337, 0
    %v342 = vsel %vm240, %v334, 0
    %344 = vmatprep.subr.bf16.mxu0 0
    %345 = vmatpush1.bf16.msra.mxu0 %v342
    %346 = vmatprep.subr.bf16.mxu0 0
    %347 = vmatpush1.bf16.msra.mxu0 0
    %348 = vmatprep.subr.bf16.mxu0 0
    %349 = vmatpush1.bf16.msra.mxu0 0
    %350 = vmatprep.subr.bf16.mxu0 0
    %351 = vmatpush1.bf16.msra.mxu0 0
    %352 = vmatprep.subr.bf16.mxu0 0
    %353 = vmatpush1.bf16.msra.mxu0 0
    %354 = vmatprep.subr.bf16.mxu0 0
    %355 = vmatpush1.bf16.msra.mxu0 0
    %356 = vmatprep.subr.bf16.mxu0 0
    %357 = vmatpush1.bf16.msra.mxu0 0
    %358 = vmatprep.subr.bf16.mxu0 0
    %359 = vmatpush1.bf16.msra.mxu0 0
    %360 = vmatprep.subr.bf16.mxu0 0
    %361 = vmatpush1.bf16.msra.mxu0 0
    %362 = vmatprep.subr.bf16.mxu0 0
    %363 = vmatpush1.bf16.msra.mxu0 0
    %364 = vmatprep.subr.bf16.mxu0 0
    %365 = vmatpush1.bf16.msra.mxu0 0
    %366 = vmatprep.subr.bf16.mxu0 0
    %367 = vmatpush1.bf16.msra.mxu0 0
    %368 = vmatprep.subr.bf16.mxu0 0
    %369 = vmatpush1.bf16.msra.mxu0 0
    %370 = vmatprep.subr.bf16.mxu0 0
    %371 = vmatpush1.bf16.msra.mxu0 0
    %372 = vmatprep.subr.bf16.mxu0 0
    %373 = vmatpush1.bf16.msra.mxu0 0
    %374 = vmatprep.subr.bf16.mxu0 0
    %375 = vmatpush1.bf16.msra.mxu0 0
    %376 = vmatprep.mubr.bf16.mxu0 0
    %377 = vmatmul.mubr.bf16.gmra.mrb[0].mxu0 %v339
    %v378 = vpop.f32.mrb[0].mxu0
    %v379 = vadd.f32 0.0, %v378
    %v380 = vpop.f32.mrb[0].mxu0
    %v381 = vpop.f32.mrb[0].mxu0
    %v382 = vpop.f32.mrb[0].mxu0
    %383 = vdwg.mxu0
    %v384 = vadd.f32 %v328, %v379
    %v385 = vpack.c.bf16 %v229, %v229
    %v386 = vld [vmem:[%s3 + $0xc] sm:$0xf]
    %388 = vrot.lane.b32.xlu0 %v385, 40
    %v389 = vpop.permute.xlu0 %388
    %v391 = vsel %vm124, %v389, 0
    %v394 = vsel %vm240, %v386, 0
    %396 = vmatprep.subr.bf16.mxu0 0
    %397 = vmatpush1.bf16.msra.mxu0 %v394
    %398 = vmatprep.subr.bf16.mxu0 0
    %399 = vmatpush1.bf16.msra.mxu0 0
    %400 = vmatprep.subr.bf16.mxu0 0
    %401 = vmatpush1.bf16.msra.mxu0 0
    %402 = vmatprep.subr.bf16.mxu0 0
    %403 = vmatpush1.bf16.msra.mxu0 0
    %404 = vmatprep.subr.bf16.mxu0 0
    %405 = vmatpush1.bf16.msra.mxu0 0
    %406 = vmatprep.subr.bf16.mxu0 0
    %407 = vmatpush1.bf16.msra.mxu0 0
    %408 = vmatprep.subr.bf16.mxu0 0
    %409 = vmatpush1.bf16.msra.mxu0 0
    %410 = vmatprep.subr.bf16.mxu0 0
    %411 = vmatpush1.bf16.msra.mxu0 0
    %412 = vmatprep.subr.bf16.mxu0 0
    %413 = vmatpush1.bf16.msra.mxu0 0
    %414 = vmatprep.subr.bf16.mxu0 0
    %415 = vmatpush1.bf16.msra.mxu0 0
    %416 = vmatprep.subr.bf16.mxu0 0
    %417 = vmatpush1.bf16.msra.mxu0 0
    %418 = vmatprep.subr.bf16.mxu0 0
    %419 = vmatpush1.bf16.msra.mxu0 0
    %420 = vmatprep.subr.bf16.mxu0 0
    %421 = vmatpush1.bf16.msra.mxu0 0
    %422 = vmatprep.subr.bf16.mxu0 0
    %423 = vmatpush1.bf16.msra.mxu0 0
    %424 = vmatprep.subr.bf16.mxu0 0
    %425 = vmatpush1.bf16.msra.mxu0 0
    %426 = vmatprep.subr.bf16.mxu0 0
    %427 = vmatpush1.bf16.msra.mxu0 0
    %428 = vmatprep.mubr.bf16.mxu0 0
    %429 = vmatmul.mubr.bf16.gmra.mrb[0].mxu0 %v391
    %v430 = vpop.f32.mrb[0].mxu0
    %v431 = vadd.f32 0.0, %v430
    %v432 = vpop.f32.mrb[0].mxu0
    %v433 = vpop.f32.mrb[0].mxu0
    %v434 = vpop.f32.mrb[0].mxu0
    %435 = vdwg.mxu0
    %v436 = vadd.f32 %v384, %v431
    %v437 = vld [vmem:[%s4] sm:$0x1]
    %v439 = vlaneseq
    %v440 = vshrl.u32 %v439, 7
    %v441 = vsub.s32 0, %v440
    %v442 = vrot.slane %v437, %v441
    %v444 = vadd.f32 %v436, %v442
    %v445 = vmul.f32 %v118, %v121
    %v446 = vsel %vm124, %v445, 0.0
    %447 = vadd.xlane.f32.xlu0 %v446
    %v448 = vpop.xlane.xlu0 %447
    %v449 = vmul.f32 %v118, %v130
    %v450 = vsel %vm124, %v449, 0.0
    %451 = vadd.xlane.f32.xlu0 %v450
    %v452 = vpop.xlane.xlu0 %451
    %v453 = vmax.f32 %v448, %v452
    %v454 = vsub.f32 %v448, %v453
    %v455 = vmul.f32 %v454, 1.442695
    %v456 = vpow.pop %v455
    %v457 = vsub.f32 %v452, %v453
    %v458 = vmul.f32 %v457, 1.442695
    %v459 = vpow.pop %v458
    %v460 = vadd.f32 %v456, %v459
    %v461 = vrcp.pop %v460
    %v462 = vmul.f32 %v456, %v461
    %v463 = vmul.f32 %v462, %v111
    %v464 = vmul.f32 %v459, %v461
    %v465 = vmul.f32 %v464, %v114
    %v466 = vadd.f32 %v463, %v465
    %468 = vrot.lane.b32.xlu0 %v445, 120
    %v469 = vpop.permute.xlu0 %468
    %v471 = vsel %vm124, %v469, 0.0
    %472 = vadd.xlane.f32.xlu0 %v471
    %v473 = vpop.xlane.xlu0 %472
    %475 = vrot.lane.b32.xlu0 %v449, 120
    %v476 = vpop.permute.xlu0 %475
    %v478 = vsel %vm124, %v476, 0.0
    %479 = vadd.xlane.f32.xlu0 %v478
    %v480 = vpop.xlane.xlu0 %479
    %v481 = vmax.f32 %v473, %v480
    %v482 = vsub.f32 %v473, %v481
    %v483 = vmul.f32 %v482, 1.442695
    %v484 = vpow.pop %v483
    %v485 = vsub.f32 %v480, %v481
    %v486 = vmul.f32 %v485, 1.442695
    %v487 = vpow.pop %v486
    %v488 = vadd.f32 %v484, %v487
    %v489 = vrcp.pop %v488
    %v490 = vmul.f32 %v484, %v489
    %v491 = vmul.f32 %v490, %v111
    %v492 = vmul.f32 %v487, %v489
    %v493 = vmul.f32 %v492, %v114
    %v494 = vadd.f32 %v491, %v493
    %495 = vrot.lane.b32.xlu0 %v445, 112
    %v496 = vpop.permute.xlu0 %495
    %v498 = vsel %vm124, %v496, 0.0
    %499 = vadd.xlane.f32.xlu0 %v498
    %v500 = vpop.xlane.xlu0 %499
    %501 = vrot.lane.b32.xlu0 %v449, 112
    %v502 = vpop.permute.xlu0 %501
    %v504 = vsel %vm124, %v502, 0.0
    %505 = vadd.xlane.f32.xlu0 %v504
    %v506 = vpop.xlane.xlu0 %505
    %v507 = vmax.f32 %v500, %v506
    %v508 = vsub.f32 %v500, %v507
    %v509 = vmul.f32 %v508, 1.442695
    %v510 = vpow.pop %v509
    %v511 = vsub.f32 %v506, %v507
    %v512 = vmul.f32 %v511, 1.442695
    %v513 = vpow.pop %v512
    %v514 = vadd.f32 %v510, %v513
    %v515 = vrcp.pop %v514
    %v516 = vmul.f32 %v510, %v515
    %v517 = vmul.f32 %v516, %v111
    %v518 = vmul.f32 %v513, %v515
    %v519 = vmul.f32 %v518, %v114
    %v520 = vadd.f32 %v517, %v519
    %521 = vrot.lane.b32.xlu0 %v445, 104
    %v522 = vpop.permute.xlu0 %521
    %v524 = vsel %vm124, %v522, 0.0
    %525 = vadd.xlane.f32.xlu0 %v524
    %v526 = vpop.xlane.xlu0 %525
    %527 = vrot.lane.b32.xlu0 %v449, 104
    %v528 = vpop.permute.xlu0 %527
    %v530 = vsel %vm124, %v528, 0.0
    %531 = vadd.xlane.f32.xlu0 %v530
    %v532 = vpop.xlane.xlu0 %531
    %v533 = vmax.f32 %v526, %v532
    %v534 = vsub.f32 %v526, %v533
    %v535 = vmul.f32 %v534, 1.442695
    %v536 = vpow.pop %v535
    %v537 = vsub.f32 %v532, %v533
    %v538 = vmul.f32 %v537, 1.442695
    %v539 = vpow.pop %v538
    %v540 = vadd.f32 %v536, %v539
    %v541 = vrcp.pop %v540
    %v542 = vmul.f32 %v536, %v541
    %v543 = vmul.f32 %v542, %v111
    %v544 = vmul.f32 %v539, %v541
    %v545 = vmul.f32 %v544, %v114
    %v546 = vadd.f32 %v543, %v545
    %v547 = vpack.c.bf16 %v466, %v466
    %v548 = vpack.c.bf16 %v494, %v494
    %550 = vrot.lane.b32.xlu0 %v548, 56
    %v551 = vpop.permute.xlu0 %550
    %v553 = vsel %vm124, %v551, 0
    %555 = vmatprep.subr.bf16.mxu0 0
    %556 = vmatpush1.bf16.msra.mxu0 %v242
    %557 = vmatprep.subr.bf16.mxu0 0
    %558 = vmatpush1.bf16.msra.mxu0 0
    %559 = vmatprep.subr.bf16.mxu0 0
    %560 = vmatpush1.bf16.msra.mxu0 0
    %561 = vmatprep.subr.bf16.mxu0 0
    %562 = vmatpush1.bf16.msra.mxu0 0
    %563 = vmatprep.subr.bf16.mxu0 0
    %564 = vmatpush1.bf16.msra.mxu0 0
    %565 = vmatprep.subr.bf16.mxu0 0
    %566 = vmatpush1.bf16.msra.mxu0 0
    %567 = vmatprep.subr.bf16.mxu0 0
    %568 = vmatpush1.bf16.msra.mxu0 0
    %569 = vmatprep.subr.bf16.mxu0 0
    %570 = vmatpush1.bf16.msra.mxu0 0
    %571 = vmatprep.subr.bf16.mxu0 0
    %572 = vmatpush1.bf16.msra.mxu0 0
    %573 = vmatprep.subr.bf16.mxu0 0
    %574 = vmatpush1.bf16.msra.mxu0 0
    %575 = vmatprep.subr.bf16.mxu0 0
    %576 = vmatpush1.bf16.msra.mxu0 0
    %577 = vmatprep.subr.bf16.mxu0 0
    %578 = vmatpush1.bf16.msra.mxu0 0
    %579 = vmatprep.subr.bf16.mxu0 0
    %580 = vmatpush1.bf16.msra.mxu0 0
    %581 = vmatprep.subr.bf16.mxu0 0
    %582 = vmatpush1.bf16.msra.mxu0 0
    %583 = vmatprep.subr.bf16.mxu0 0
    %584 = vmatpush1.bf16.msra.mxu0 0
    %585 = vmatprep.subr.bf16.mxu0 0
    %586 = vmatpush1.bf16.msra.mxu0 0
    %587 = vmatprep.mubr.bf16.mxu0 0
    %588 = vmatmul.mubr.bf16.gmra.mrb[0].mxu0 %v553
    %v589 = vpop.f32.mrb[0].mxu0
    %v590 = vadd.f32 0.0, %v589
    %v591 = vpop.f32.mrb[0].mxu0
    %v592 = vpop.f32.mrb[0].mxu0
    %v593 = vpop.f32.mrb[0].mxu0
    %594 = vdwg.mxu0
    %596 = vrot.lane.b32.xlu0 %v547, 64
    %v597 = vpop.permute.xlu0 %596
    %v599 = vsel %vm124, %v597, 0
    %601 = vmatprep.subr.bf16.mxu0 0
    %602 = vmatpush1.bf16.msra.mxu0 %v291
    %603 = vmatprep.subr.bf16.mxu0 0
    %604 = vmatpush1.bf16.msra.mxu0 0
    %605 = vmatprep.subr.bf16.mxu0 0
    %606 = vmatpush1.bf16.msra.mxu0 0
    %607 = vmatprep.subr.bf16.mxu0 0
    %608 = vmatpush1.bf16.msra.mxu0 0
    %609 = vmatprep.subr.bf16.mxu0 0
    %610 = vmatpush1.bf16.msra.mxu0 0
    %611 = vmatprep.subr.bf16.mxu0 0
    %612 = vmatpush1.bf16.msra.mxu0 0
    %613 = vmatprep.subr.bf16.mxu0 0
    %614 = vmatpush1.bf16.msra.mxu0 0
    %615 = vmatprep.subr.bf16.mxu0 0
    %616 = vmatpush1.bf16.msra.mxu0 0
    %617 = vmatprep.subr.bf16.mxu0 0
    %618 = vmatpush1.bf16.msra.mxu0 0
    %619 = vmatprep.subr.bf16.mxu0 0
    %620 = vmatpush1.bf16.msra.mxu0 0
    %621 = vmatprep.subr.bf16.mxu0 0
    %622 = vmatpush1.bf16.msra.mxu0 0
    %623 = vmatprep.subr.bf16.mxu0 0
    %624 = vmatpush1.bf16.msra.mxu0 0
    %625 = vmatprep.subr.bf16.mxu0 0
    %626 = vmatpush1.bf16.msra.mxu0 0
    %627 = vmatprep.subr.bf16.mxu0 0
    %628 = vmatpush1.bf16.msra.mxu0 0
    %629 = vmatprep.subr.bf16.mxu0 0
    %630 = vmatpush1.bf16.msra.mxu0 0
    %631 = vmatprep.subr.bf16.mxu0 0
    %632 = vmatpush1.bf16.msra.mxu0 0
    %633 = vmatprep.mubr.bf16.mxu0 0
    %634 = vmatmul.mubr.bf16.gmra.mrb[0].mxu0 %v599
    %v635 = vpop.f32.mrb[0].mxu0
    %v636 = vadd.f32 %v590, %v635
    %v637 = vpop.f32.mrb[0].mxu0
    %v638 = vpop.f32.mrb[0].mxu0
    %v639 = vpop.f32.mrb[0].mxu0
    %640 = vdwg.mxu0
    %v641 = vpack.c.bf16 %v520, %v520
    %643 = vrot.lane.b32.xlu0 %v641, 48
    %v644 = vpop.permute.xlu0 %643
    %v646 = vsel %vm124, %v644, 0
    %648 = vmatprep.subr.bf16.mxu0 0
    %649 = vmatpush1.bf16.msra.mxu0 %v342
    %650 = vmatprep.subr.bf16.mxu0 0
    %651 = vmatpush1.bf16.msra.mxu0 0
    %652 = vmatprep.subr.bf16.mxu0 0
    %653 = vmatpush1.bf16.msra.mxu0 0
    %654 = vmatprep.subr.bf16.mxu0 0
    %655 = vmatpush1.bf16.msra.mxu0 0
    %656 = vmatprep.subr.bf16.mxu0 0
    %657 = vmatpush1.bf16.msra.mxu0 0
    %658 = vmatprep.subr.bf16.mxu0 0
    %659 = vmatpush1.bf16.msra.mxu0 0
    %660 = vmatprep.subr.bf16.mxu0 0
    %661 = vmatpush1.bf16.msra.mxu0 0
    %662 = vmatprep.subr.bf16.mxu0 0
    %663 = vmatpush1.bf16.msra.mxu0 0
    %664 = vmatprep.subr.bf16.mxu0 0
    %665 = vmatpush1.bf16.msra.mxu0 0
    %666 = vmatprep.subr.bf16.mxu0 0
    %667 = vmatpush1.bf16.msra.mxu0 0
    %668 = vmatprep.subr.bf16.mxu0 0
    %669 = vmatpush1.bf16.msra.mxu0 0
    %670 = vmatprep.subr.bf16.mxu0 0
    %671 = vmatpush1.bf16.msra.mxu0 0
    %672 = vmatprep.subr.bf16.mxu0 0
    %673 = vmatpush1.bf16.msra.mxu0 0
    %674 = vmatprep.subr.bf16.mxu0 0
    %675 = vmatpush1.bf16.msra.mxu0 0
    %676 = vmatprep.subr.bf16.mxu0 0
    %677 = vmatpush1.bf16.msra.mxu0 0
    %678 = vmatprep.subr.bf16.mxu0 0
    %679 = vmatpush1.bf16.msra.mxu0 0
    %680 = vmatprep.mubr.bf16.mxu0 0
    %681 = vmatmul.mubr.bf16.gmra.mrb[0].mxu0 %v646
    %v682 = vpop.f32.mrb[0].mxu0
    %v683 = vadd.f32 0.0, %v682
    %v684 = vpop.f32.mrb[0].mxu0
    %v685 = vpop.f32.mrb[0].mxu0
    %v686 = vpop.f32.mrb[0].mxu0
    %687 = vdwg.mxu0
    %v688 = vadd.f32 %v636, %v683
    %v689 = vpack.c.bf16 %v546, %v546
    %691 = vrot.lane.b32.xlu0 %v689, 40
    %v692 = vpop.permute.xlu0 %691
    %v694 = vsel %vm124, %v692, 0
    %696 = vmatprep.subr.bf16.mxu0 0
    %697 = vmatpush1.bf16.msra.mxu0 %v394
    %698 = vmatprep.subr.bf16.mxu0 0
    %699 = vmatpush1.bf16.msra.mxu0 0
    %700 = vmatprep.subr.bf16.mxu0 0
    %701 = vmatpush1.bf16.msra.mxu0 0
    %702 = vmatprep.subr.bf16.mxu0 0
    %703 = vmatpush1.bf16.msra.mxu0 0
    %704 = vmatprep.subr.bf16.mxu0 0
    %705 = vmatpush1.bf16.msra.mxu0 0
    %706 = vmatprep.subr.bf16.mxu0 0
    %707 = vmatpush1.bf16.msra.mxu0 0
    %708 = vmatprep.subr.bf16.mxu0 0
    %709 = vmatpush1.bf16.msra.mxu0 0
    %710 = vmatprep.subr.bf16.mxu0 0
    %711 = vmatpush1.bf16.msra.mxu0 0
    %712 = vmatprep.subr.bf16.mxu0 0
    %713 = vmatpush1.bf16.msra.mxu0 0
    %714 = vmatprep.subr.bf16.mxu0 0
    %715 = vmatpush1.bf16.msra.mxu0 0
    %716 = vmatprep.subr.bf16.mxu0 0
    %717 = vmatpush1.bf16.msra.mxu0 0
    %718 = vmatprep.subr.bf16.mxu0 0
    %719 = vmatpush1.bf16.msra.mxu0 0
    %720 = vmatprep.subr.bf16.mxu0 0
    %721 = vmatpush1.bf16.msra.mxu0 0
    %722 = vmatprep.subr.bf16.mxu0 0
    %723 = vmatpush1.bf16.msra.mxu0 0
    %724 = vmatprep.subr.bf16.mxu0 0
    %725 = vmatpush1.bf16.msra.mxu0 0
    %726 = vmatprep.subr.bf16.mxu0 0
    %727 = vmatpush1.bf16.msra.mxu0 0
    %728 = vmatprep.mubr.bf16.mxu0 0
    %729 = vmatmul.mubr.bf16.gmra.mrb[0].mxu0 %v694
    %v730 = vpop.f32.mrb[0].mxu0
    %v731 = vadd.f32 0.0, %v730
    %v732 = vpop.f32.mrb[0].mxu0
    %v733 = vpop.f32.mrb[0].mxu0
    %v734 = vpop.f32.mrb[0].mxu0
    %735 = vdwg.mxu0
    %v736 = vadd.f32 %v688, %v731
    %v737 = vadd.f32 %v736, %v442
    %v738 = vadd.f32 %v46, %v444
    %v739 = vadd.f32 %v47, %v737
    %v740 = vld [vmem:[%s5] sm:$0x1]
    %v741 = vld [vmem:[%s6] sm:$0x1]
    %v742 = vsel %vm72, %v738, 0.0
    %743 = vadd.xlane.f32.xlu0 %v742
    %v744 = vpop.xlane.xlu0 %743
    %v745 = vsel %vm72, %v739, 0.0
    %746 = vadd.xlane.f32.xlu0 %v745
    %v747 = vpop.xlane.xlu0 %746
    %v748 = vrcp.pop 32.0
    %v749 = vmul.f32 %v744, %v748
    %v750 = vmul.f32 %v747, %v748
    %v751 = vsub.f32 %v738, %v749
    %v752 = vsub.f32 %v739, %v750
    %v753 = vmul.f32 %v751, %v751
    %v754 = vmul.f32 %v752, %v752
    %v755 = vsel %vm72, %v753, 0.0
    %756 = vadd.xlane.f32.xlu0 %v755
    %v757 = vpop.xlane.xlu0 %756
    %v758 = vsel %vm72, %v754, 0.0
    %759 = vadd.xlane.f32.xlu0 %v758
    %v760 = vpop.xlane.xlu0 %759
    %v761 = vmul.f32 %v757, %v748
    %v762 = vmul.f32 %v760, %v748
    %v763 = vadd.f32 %v761, 1e-05
    %v764 = vadd.f32 %v762, 1e-05
    %v765 = vrsqrt.pop %v763
    %v766 = vrsqrt.pop %v764
    %v767 = vmul.f32 %v751, %v765
    %v768 = vmul.f32 %v752, %v766
    %v770 = vlaneseq
    %v771 = vshrl.u32 %v770, 7
    %v772 = vsub.s32 0, %v771
    %v773 = vrot.slane %v740, %v772
    %v775 = vmul.f32 %v767, %v773
    %v776 = vmul.f32 %v768, %v773
    %v778 = vlaneseq
    %v779 = vshrl.u32 %v778, 7
    %v780 = vsub.s32 0, %v779
    %v781 = vrot.slane %v741, %v780
    %v783 = vadd.f32 %v775, %v781
    %v784 = vadd.f32 %v776, %v781
    %v785 = vpack.c.bf16 %v784, %v783
    %v786 = vld [vmem:[%s9] sm:$0xf]
    %v787 = vld [vmem:[%s9 + $0x4] sm:$0xf]
    %v788 = vld [vmem:[%s9 + $0x8] sm:$0xf]
    %v789 = vld [vmem:[%s9 + $0xc] sm:$0xf]
    %v790 = vld [vmem:[%s10] sm:$0x1]
    %v792 = vlaneseq
    %v793 = vshrl.u32 %v792, 7
    %v794 = vsub.s32 0, %v793
    %v795 = vrot.slane %v790, %v794
    %v801 = vunpack.c.l.b16 %v786
    %v802 = vunpack.c.l.b16 %v787
    %v803 = vunpack.c.l.b16 %v788
    %v804 = vunpack.c.l.b16 %v789
    %v805 = vpack.c.b16 %v802, %v801
    %v806 = vpack.c.b16 %v804, %v803
    %v810 = vsel %vm72, %v785, 0
    %812 = vmatprep.subr.bf16.mxu0 0
    %813 = vmatpush1.bf16.msra.mxu0 %v805
    %814 = vmatprep.subr.bf16.mxu0 0
    %815 = vmatpush1.bf16.msra.mxu0 %v806
    %816 = vmatprep.subr.bf16.mxu0 0
    %817 = vmatpush1.bf16.msra.mxu0 0
    %818 = vmatprep.subr.bf16.mxu0 0
    %819 = vmatpush1.bf16.msra.mxu0 0
    %820 = vmatprep.subr.bf16.mxu0 0
    %821 = vmatpush1.bf16.msra.mxu0 0
    %822 = vmatprep.subr.bf16.mxu0 0
    %823 = vmatpush1.bf16.msra.mxu0 0
    %824 = vmatprep.subr.bf16.mxu0 0
    %825 = vmatpush1.bf16.msra.mxu0 0
    %826 = vmatprep.subr.bf16.mxu0 0
    %827 = vmatpush1.bf16.msra.mxu0 0
    %828 = vmatprep.subr.bf16.mxu0 0
    %829 = vmatpush1.bf16.msra.mxu0 0
    %830 = vmatprep.subr.bf16.mxu0 0
    %831 = vmatpush1.bf16.msra.mxu0 0
    %832 = vmatprep.subr.bf16.mxu0 0
    %833 = vmatpush1.bf16.msra.mxu0 0
    %834 = vmatprep.subr.bf16.mxu0 0
    %835 = vmatpush1.bf16.msra.mxu0 0
    %836 = vmatprep.subr.bf16.mxu0 0
    %837 = vmatpush1.bf16.msra.mxu0 0
    %838 = vmatprep.subr.bf16.mxu0 0
    %839 = vmatpush1.bf16.msra.mxu0 0
    %840 = vmatprep.subr.bf16.mxu0 0
    %841 = vmatpush1.bf16.msra.mxu0 0
    %842 = vmatprep.subr.bf16.mxu0 0
    %843 = vmatpush1.bf16.msra.mxu0 0
    %844 = vmatprep.mubr.bf16.mxu0 0
    %845 = vmatmul.mubr.bf16.gmra.mrb[0].mxu0 %v810
    %v846 = vpop.f32.mrb[0].mxu0
    %v847 = vadd.f32 %v795, %v846
    %v848 = vpop.f32.mrb[0].mxu0
    %v849 = vpop.f32.mrb[0].mxu0
    %v850 = vadd.f32 %v795, %v849
    %v851 = vpop.f32.mrb[0].mxu0
    %852 = vdwg.mxu0
    %v853 = vmul.f32 %v847, 0.5
    %v854 = vmul.f32 %v850, 0.5
    %v855 = vmul.f32 %v847, 0.70710677
    %v856 = vmul.f32 %v850, 0.70710677
    %v857 = verf.f32.pop %v855
    %v858 = verf.f32.pop %v856
    %v859 = vadd.f32 %v857, 1.0
    %v860 = vadd.f32 %v858, 1.0
    %v861 = vmul.f32 %v853, %v859
    %v862 = vmul.f32 %v854, %v860
    %v863 = vpack.c.bf16 %v862, %v861
    %v864 = vld [vmem:[%s11] sm:$0xf]
    %v865 = vld [vmem:[%s11 + $0x4] sm:$0xf]
    %v866 = vld [vmem:[%s11 + $0x8] sm:$0xf]
    %v867 = vld [vmem:[%s11 + $0xc] sm:$0xf]
    %v868 = vld [vmem:[%s11 + $0x10] sm:$0xf]
    %v869 = vld [vmem:[%s11 + $0x14] sm:$0xf]
    %v870 = vld [vmem:[%s11 + $0x18] sm:$0xf]
    %v871 = vld [vmem:[%s11 + $0x1c] sm:$0xf]
    %v872 = vld [vmem:[%s11 + $0x20] sm:$0xf]
    %v873 = vld [vmem:[%s11 + $0x24] sm:$0xf]
    %v874 = vld [vmem:[%s11 + $0x28] sm:$0xf]
    %v875 = vld [vmem:[%s11 + $0x2c] sm:$0xf]
    %v876 = vld [vmem:[%s11 + $0x30] sm:$0xf]
    %v877 = vld [vmem:[%s11 + $0x34] sm:$0xf]
    %v878 = vld [vmem:[%s11 + $0x38] sm:$0xf]
    %v879 = vld [vmem:[%s11 + $0x3c] sm:$0xf]
    %v880 = vld [vmem:[%s12] sm:$0x1]
    %v882 = vlaneseq
    %v883 = vshrl.u32 %v882, 7
    %v884 = vsub.s32 0, %v883
    %v885 = vrot.slane %v880, %v884
    %v903 = vunpack.c.l.b16 %v864
    %v904 = vunpack.c.l.b16 %v865
    %v905 = vunpack.c.l.b16 %v866
    %v906 = vunpack.c.l.b16 %v867
    %v907 = vunpack.c.l.b16 %v868
    %v908 = vunpack.c.l.b16 %v869
    %v909 = vunpack.c.l.b16 %v870
    %v910 = vunpack.c.l.b16 %v871
    %v911 = vunpack.c.l.b16 %v872
    %v912 = vunpack.c.l.b16 %v873
    %v913 = vunpack.c.l.b16 %v874
    %v914 = vunpack.c.l.b16 %v875
    %v915 = vunpack.c.l.b16 %v876
    %v916 = vunpack.c.l.b16 %v877
    %v917 = vunpack.c.l.b16 %v878
    %v918 = vunpack.c.l.b16 %v879
    %v919 = vpack.c.b16 %v904, %v903
    %v920 = vpack.c.b16 %v906, %v905
    %v921 = vpack.c.b16 %v908, %v907
    %v922 = vpack.c.b16 %v910, %v909
    %v923 = vpack.c.b16 %v912, %v911
    %v924 = vpack.c.b16 %v914, %v913
    %v925 = vpack.c.b16 %v916, %v915
    %v926 = vpack.c.b16 %v918, %v917
    %935 = vmatprep.subr.bf16.mxu0 0
    %936 = vmatpush1.bf16.msra.mxu0 %v919
    %937 = vmatprep.subr.bf16.mxu0 0
    %938 = vmatpush1.bf16.msra.mxu0 %v920
    %939 = vmatprep.subr.bf16.mxu0 0
    %940 = vmatpush1.bf16.msra.mxu0 %v921
    %941 = vmatprep.subr.bf16.mxu0 0
    %942 = vmatpush1.bf16.msra.mxu0 %v922
    %943 = vmatprep.subr.bf16.mxu0 0
    %944 = vmatpush1.bf16.msra.mxu0 %v923
    %945 = vmatprep.subr.bf16.mxu0 0
    %946 = vmatpush1.bf16.msra.mxu0 %v924
    %947 = vmatprep.subr.bf16.mxu0 0
    %948 = vmatpush1.bf16.msra.mxu0 %v925
    %949 = vmatprep.subr.bf16.mxu0 0
    %950 = vmatpush1.bf16.msra.mxu0 %v926
    %951 = vmatprep.subr.bf16.mxu0 0
    %952 = vmatpush1.bf16.msra.mxu0 0
    %953 = vmatprep.subr.bf16.mxu0 0
    %954 = vmatpush1.bf16.msra.mxu0 0
    %955 = vmatprep.subr.bf16.mxu0 0
    %956 = vmatpush1.bf16.msra.mxu0 0
    %957 = vmatprep.subr.bf16.mxu0 0
    %958 = vmatpush1.bf16.msra.mxu0 0
    %959 = vmatprep.subr.bf16.mxu0 0
    %960 = vmatpush1.bf16.msra.mxu0 0
    %961 = vmatprep.subr.bf16.mxu0 0
    %962 = vmatpush1.bf16.msra.mxu0 0
    %963 = vmatprep.subr.bf16.mxu0 0
    %964 = vmatpush1.bf16.msra.mxu0 0
    %965 = vmatprep.subr.bf16.mxu0 0
    %966 = vmatpush1.bf16.msra.mxu0 0
    %967 = vmatprep.mubr.bf16.mxu0 0
    %968 = vmatmul.mubr.bf16.gmra.mrb[0].mxu0 %v863
    %v969 = vpop.f32.mrb[0].mxu0
    %v970 = vadd.f32 %v885, %v969
    %v971 = vpop.f32.mrb[0].mxu0
    %v972 = vpop.f32.mrb[0].mxu0
    %v973 = vadd.f32 %v885, %v972
    %v974 = vpop.f32.mrb[0].mxu0
    %975 = vdwg.mxu0
    %v976 = vadd.f32 %v783, %v970
    %v977 = vadd.f32 %v784, %v973
    %v978 = vld [vmem:[%s7] sm:$0x1]
    %v979 = vld [vmem:[%s8] sm:$0x1]
    %v980 = vsel %vm72, %v976, 0.0
    %981 = vadd.xlane.f32.xlu0 %v980
    %v982 = vpop.xlane.xlu0 %981
    %v983 = vsel %vm72, %v977, 0.0
    %984 = vadd.xlane.f32.xlu0 %v983
    %v985 = vpop.xlane.xlu0 %984
    %v986 = vmul.f32 %v982, %v748
    %v987 = vmul.f32 %v985, %v748
    %v988 = vsub.f32 %v976, %v986
    %v989 = vsub.f32 %v977, %v987
    %v990 = vmul.f32 %v988, %v988
    %v991 = vmul.f32 %v989, %v989
    %v992 = vsel %vm72, %v990, 0.0
    %993 = vadd.xlane.f32.xlu0 %v992
    %v994 = vpop.xlane.xlu0 %993
    %v995 = vsel %vm72, %v991, 0.0
    %996 = vadd.xlane.f32.xlu0 %v995
    %v997 = vpop.xlane.xlu0 %996
    %v998 = vmul.f32 %v994, %v748
    %v999 = vmul.f32 %v997, %v748
    %v1000 = vadd.f32 %v998, 1e-05
    %v1001 = vadd.f32 %v999, 1e-05
    %v1002 = vrsqrt.pop %v1000
    %v1003 = vrsqrt.pop %v1001
    %v1004 = vmul.f32 %v988, %v1002
    %v1005 = vmul.f32 %v989, %v1003
    %v1007 = vlaneseq
    %v1008 = vshrl.u32 %v1007, 7
    %v1009 = vsub.s32 0, %v1008
    %v1010 = vrot.slane %v978, %v1009
    %v1012 = vmul.f32 %v1004, %v1010
    %v1013 = vmul.f32 %v1005, %v1010
    %v1015 = vlaneseq
    %v1016 = vshrl.u32 %v1015, 7
    %v1017 = vsub.s32 0, %v1016
    %v1018 = vrot.slane %v979, %v1017
    %v1020 = vadd.f32 %v1012, %v1018
    %v1021 = vadd.f32 %v1013, %v1018
    %1022 = vst.msk [vmem:[#allocation2] sm:$0xff] %vm72, %v1020
    %1023 = vst.msk [vmem:[#allocation2 + $0x8] sm:$0xff] %vm72, %v1021
    // Predicated region
    $region54: #{multi_framework_processor.3} parent=1 // pred_check
      _
    $region55: #{multi_framework_processor.3} parent=1 // pred_check_branch
      %1025 = sbr.rel (0) target = $region57
    $region56: #{multi_framework_processor.3} parent=1 // pred_region
      %s1027 = ssub.s32 256, 256
      %1028 = vsyncadd [#allocation3], %s1027
      %s1029 = sshll.u32 [#allocation2], 4
      %s1030 = int_to_ptr.vmem [resolvable:$true] %s1029
      %1035 = dma.vmem_to_hbm [thread:$0]  %s1030, 256, %s13, [#allocation3], 128, 128, 8
    $region57: #{multi_framework_processor.3} parent=1 // pred_fallthru
      _
    // Predicated region
    $region58: #{multi_framework_processor.3} parent=1 // pred_check
      _
    $region59: #{multi_framework_processor.3} parent=1 // pred_check_branch
      %1037 = sbr.rel (0) target = $region61
    $region60: #{multi_framework_processor.3} parent=1 // pred_region
      %1038 = dma.done [#allocation3], 256
    $region61: #{multi_framework_processor.3} parent=1 // pred_fallthru
      _
    %1039 = vsyncpa [#allocation3], 1

</llo_original>
